<compile_context>
chip_gen: v7x
topology: tpu7x:2x2x1
jax: 0.10.0
libtpu: 0.0.40
codegen_flags: <defaults>
</compile_context>

<pallas_src>
import functools

import jax
import jax.numpy as jnp
from jax.experimental import pallas as pl
from jax.experimental.pallas import tpu as pltpu

TEMPERATURE = 0.07
_NORM_EPS = 1e-12  # F.normalize eps


def _simclr_tile_kernel(ori_ref, adv_ref, out_ref,
                        orin_sc, l_sc, ssum_sc, ssq_sc, diag_sc,
                        *, inv_temp):
    i = pl.program_id(0)   # row (query) block
    j = pl.program_id(1)   # column (key) block -- reduction axis, last in grid

    tm = l_sc.shape[0]

    @pl.when(j == 0)
    def _init():
        # Normalize + fold 1/temperature into the row operand, once per row
        # block (the ori block index is constant across j, so the data is
        # already resident; we just avoid recomputing the normalization).
        ori = ori_ref[...].astype(jnp.float32)                       # (TM, D)
        ss = jnp.maximum(jnp.sum(ori * ori, axis=1, keepdims=True),
                         jnp.float32(_NORM_EPS * _NORM_EPS))
        orin_sc[...] = ori * (jax.lax.rsqrt(ss) * jnp.float32(inv_temp))
        l_sc[...] = jnp.zeros((tm, 1), jnp.float32)
        ssum_sc[...] = jnp.zeros((tm, 1), jnp.float32)
        ssq_sc[...] = jnp.zeros((tm, 1), jnp.float32)
        diag_sc[...] = jnp.zeros((tm, 1), jnp.float32)

    adv = adv_ref[...].astype(jnp.float32)                           # (TN, D)
    ass = jnp.maximum(jnp.sum(adv * adv, axis=1, keepdims=True),
                      jnp.float32(_NORM_EPS * _NORM_EPS))
    adv_n = adv * jax.lax.rsqrt(ass)
    ori_n = orin_sc[...]                                             # (TM, D), has 1/T folded

    # "nt" contraction over the feature dim -> MXU directly, no transpose.
    s = jax.lax.dot_general(ori_n, adv_n, (((1,), (1,)), ((), ())),
                            preferred_element_type=jnp.float32)      # (TM, TN)

    # |s| <= 1/temperature (cosine similarities / T), so exp(s) stays far from
    # f32 overflow: no max-shift / online-softmax rescaling needed.
    l_sc[...] = l_sc[...] + jnp.sum(jnp.exp(s), axis=1, keepdims=True)
    ssum_sc[...] = ssum_sc[...] + jnp.sum(s, axis=1, keepdims=True)
    ssq_sc[...] = ssq_sc[...] + jnp.sum(s * s, axis=1, keepdims=True)

    # Diagonal logits live only in the (i == j) tile; get them with a row-wise
    # dot (no [TM, TN] iota mask, no gather).
    @pl.when(i == j)
    def _diag():
        diag_sc[...] = jnp.sum(ori_n * adv_n, axis=1, keepdims=True)

    @pl.when(j == pl.num_programs(1) - 1)
    def _finalize():
        lse = jnp.log(l_sc[...])                 # (TM, 1) row logsumexp (max shift = 0)
        d = diag_sc[...]
        # -sum_{j!=i} s_j * log_p_j  with  log_p_j = s_j - lse
        out_ref[...] = -(ssq_sc[...] - lse * ssum_sc[...]) + (d * d - lse * d)


def simclr_loss_fea(ori_pc_fea, adv_pc_fea, *, temperature=TEMPERATURE, block=None):
    """ori_pc_fea, adv_pc_fea: [N, D] float arrays. Returns scalar float32 loss."""
    n, dfeat = ori_pc_fea.shape
    assert adv_pc_fea.shape == (n, dfeat)

    # Square tiles so the diagonal lives in the (i == j) tile; pick the largest
    # power-of-two tile that divides N (fall back to a single tile).
    if block is None:
        block = next((t for t in (256, 128, 64, 32, 16, 8) if n % t == 0), n)
    tm = min(block, n)
    if n % tm != 0:
        tm = n
    tn = tm
    grid = (n // tm, n // tn)

    kernel = functools.partial(_simclr_tile_kernel, inv_temp=1.0 / temperature)

    per_row = pl.pallas_call(
        kernel,
        out_shape=jax.ShapeDtypeStruct((n, 1), jnp.float32),
        grid_spec=pltpu.PrefetchScalarGridSpec(
            num_scalar_prefetch=0,
            grid=grid,
            in_specs=[
                pl.BlockSpec((tm, dfeat), lambda i, j: (i, 0)),   # ori row block
                pl.BlockSpec((tn, dfeat), lambda i, j: (j, 0)),   # adv column block
            ],
            out_specs=pl.BlockSpec((tm, 1), lambda i, j: (i, 0)),
            scratch_shapes=[
                pltpu.VMEM((tm, dfeat), jnp.float32),   # cached normalized/scaled ori rows
                pltpu.VMEM((tm, 1), jnp.float32),       # sum_j exp(s)
                pltpu.VMEM((tm, 1), jnp.float32),       # sum_j s
                pltpu.VMEM((tm, 1), jnp.float32),       # sum_j s^2
                pltpu.VMEM((tm, 1), jnp.float32),       # diagonal logit
            ],
        ),
        compiler_params=pltpu.CompilerParams(
            dimension_semantics=("parallel", "arbitrary"),
        ),
    )(ori_pc_fea, adv_pc_fea)

    # CrossEntropyLoss reduction='mean' over rows; .sum() on a scalar is a no-op.
    return jnp.mean(per_row)


def _reference_loss(ori, adv):
    # Pure-JAX reference for sanity checking.
    ori = ori / jnp.maximum(jnp.linalg.norm(ori, axis=1, keepdims=True), _NORM_EPS)
    adv = adv / jnp.maximum(jnp.linalg.norm(adv, axis=1, keepdims=True), _NORM_EPS)
    s = ori @ adv.T / TEMPERATURE
    labels = s - jnp.diag(jnp.diag(s))
    log_p = jax.nn.log_softmax(s, axis=1)
    return jnp.mean(-jnp.sum(labels * log_p, axis=1))


if __name__ == "__main__":
    key = jax.random.PRNGKey(0)
    k1, k2 = jax.random.split(key)
    # Small but tile-aligned shapes: exercises a 2x2 grid with 128x128 tiles.
    N, D = 256, 128
    ori_pc_fea = jax.random.normal(k1, (N, D), dtype=jnp.float32)
    adv_pc_fea = jax.random.normal(k2, (N, D), dtype=jnp.float32)

    loss = simclr_loss_fea(ori_pc_fea, adv_pc_fea, block=128)
    jax.block_until_ready(loss)

    ref = _reference_loss(ori_pc_fea, adv_pc_fea)
    assert jnp.allclose(loss, ref, rtol=1e-3, atol=1e-3), (loss, ref)

    print("KERNEL_OK")
</pallas_src>

<mosaic_0001>
module attributes {stable_mosaic.version = 11 : i64} {
  func.func @_simclr_tile_kernel(%arg0: i32, %arg1: i32, %arg2: memref<128x128xf32, #tpu.memory_space<vmem>>, %arg3: memref<128x128xf32, #tpu.memory_space<vmem>>, %arg4: memref<128x1xf32, #tpu.memory_space<vmem>>, %arg5: memref<128x128xf32, #tpu.memory_space<vmem>>, %arg6: memref<128x1xf32, #tpu.memory_space<vmem>>, %arg7: memref<128x1xf32, #tpu.memory_space<vmem>>, %arg8: memref<128x1xf32, #tpu.memory_space<vmem>>, %arg9: memref<128x1xf32, #tpu.memory_space<vmem>>) attributes {dimension_semantics = [#tpu.dimension_semantics<parallel>, #tpu.dimension_semantics<arbitrary>], iteration_bounds = array<i64: 2, 2>, scalar_prefetch = 0 : i64, scratch_operands = 5 : i64, tpu.core_type = #tpu.core_type<tc>, window_params = [{transform_indices = @transform_0, window_bounds = array<i64: 128, 128>}, {transform_indices = @transform_1, window_bounds = array<i64: 128, 128>}, {transform_indices = @transform_2, window_bounds = array<i64: 128, 1>}]} {
    %c0_i32 = arith.constant 0 : i32
    %0 = arith.cmpi eq, %arg1, %c0_i32 : i32
    %1 = arith.extui %0 : i1 to i32
    %c0_i32_0 = arith.constant 0 : i32
    %2 = arith.cmpi ne, %1, %c0_i32_0 : i32
    scf.if %2 {
      %c0_23 = arith.constant 0 : index
      %c0_24 = arith.constant 0 : index
      %37 = vector.load %arg2[%c0_23, %c0_24] : memref<128x128xf32, #tpu.memory_space<vmem>>, vector<128x128xf32>
      %38 = arith.mulf %37, %37 : vector<128x128xf32>
      %cst_25 = arith.constant dense<0.000000e+00> : vector<128xf32>
      %39 = vector.multi_reduction <add>, %38, %cst_25 [1] : vector<128x128xf32> to vector<128xf32>
      %40 = vector.shape_cast %39 : vector<128xf32> to vector<128x1xf32>
      %cst_26 = arith.constant 1.000000e-24 : f32
      %41 = vector.broadcast %cst_26 : f32 to vector<128x1xf32>
      %42 = arith.maximumf %40, %41 : vector<128x1xf32>
      %43 = math.rsqrt %42 : vector<128x1xf32>
      %cst_27 = arith.constant 14.2857141 : f32
      %44 = vector.broadcast %cst_27 : f32 to vector<128x1xf32>
      %45 = arith.mulf %43, %44 : vector<128x1xf32>
      %46 = vector.broadcast %45 : vector<128x1xf32> to vector<128x128xf32>
      %47 = arith.mulf %37, %46 : vector<128x128xf32>
      %c0_28 = arith.constant 0 : index
      %c0_29 = arith.constant 0 : index
      %48 = vector.load %arg5[%c0_28, %c0_29] : memref<128x128xf32, #tpu.memory_space<vmem>>, vector<128x128xf32>
      tpu.vector_store %arg5[%c0_28, %c0_29], %47 {strides = array<i32>} : memref<128x128xf32, #tpu.memory_space<vmem>>, vector<128x128xf32>,
      %cst_30 = arith.constant 0.000000e+00 : f32
      %49 = vector.broadcast %cst_30 : f32 to vector<128x1xf32>
      %c0_31 = arith.constant 0 : index
      %c0_32 = arith.constant 0 : index
      %50 = vector.load %arg6[%c0_31, %c0_32] : memref<128x1xf32, #tpu.memory_space<vmem>>, vector<128x1xf32>
      tpu.vector_store %arg6[%c0_31, %c0_32], %49 {strides = array<i32>} : memref<128x1xf32, #tpu.memory_space<vmem>>, vector<128x1xf32>,
      %cst_33 = arith.constant 0.000000e+00 : f32
      %51 = vector.broadcast %cst_33 : f32 to vector<128x1xf32>
      %c0_34 = arith.constant 0 : index
      %c0_35 = arith.constant 0 : index
      %52 = vector.load %arg7[%c0_34, %c0_35] : memref<128x1xf32, #tpu.memory_space<vmem>>, vector<128x1xf32>
      tpu.vector_store %arg7[%c0_34, %c0_35], %51 {strides = array<i32>} : memref<128x1xf32, #tpu.memory_space<vmem>>, vector<128x1xf32>,
      %cst_36 = arith.constant 0.000000e+00 : f32
      %53 = vector.broadcast %cst_36 : f32 to vector<128x1xf32>
      %c0_37 = arith.constant 0 : index
      %c0_38 = arith.constant 0 : index
      %54 = vector.load %arg8[%c0_37, %c0_38] : memref<128x1xf32, #tpu.memory_space<vmem>>, vector<128x1xf32>
      tpu.vector_store %arg8[%c0_37, %c0_38], %53 {strides = array<i32>} : memref<128x1xf32, #tpu.memory_space<vmem>>, vector<128x1xf32>,
      %cst_39 = arith.constant 0.000000e+00 : f32
      %55 = vector.broadcast %cst_39 : f32 to vector<128x1xf32>
      %c0_40 = arith.constant 0 : index
      %c0_41 = arith.constant 0 : index
      %56 = vector.load %arg9[%c0_40, %c0_41] : memref<128x1xf32, #tpu.memory_space<vmem>>, vector<128x1xf32>
      tpu.vector_store %arg9[%c0_40, %c0_41], %55 {strides = array<i32>} : memref<128x1xf32, #tpu.memory_space<vmem>>, vector<128x1xf32>,
    } else {
    }
    %c0 = arith.constant 0 : index
    %c0_1 = arith.constant 0 : index
    %3 = vector.load %arg3[%c0, %c0_1] : memref<128x128xf32, #tpu.memory_space<vmem>>, vector<128x128xf32>
    %4 = arith.mulf %3, %3 : vector<128x128xf32>
    %cst = arith.constant dense<0.000000e+00> : vector<128xf32>
    %5 = vector.multi_reduction <add>, %4, %cst [1] : vector<128x128xf32> to vector<128xf32>
    %6 = vector.shape_cast %5 : vector<128xf32> to vector<128x1xf32>
    %cst_2 = arith.constant 1.000000e-24 : f32
    %7 = vector.broadcast %cst_2 : f32 to vector<128x1xf32>
    %8 = arith.maximumf %6, %7 : vector<128x1xf32>
    %9 = math.rsqrt %8 : vector<128x1xf32>
    %10 = vector.broadcast %9 : vector<128x1xf32> to vector<128x128xf32>
    %11 = arith.mulf %3, %10 : vector<128x128xf32>
    %c0_3 = arith.constant 0 : index
    %c0_4 = arith.constant 0 : index
    %12 = vector.load %arg5[%c0_3, %c0_4] : memref<128x128xf32, #tpu.memory_space<vmem>>, vector<128x128xf32>
    %cst_5 = arith.constant dense<0.000000e+00> : vector<128x128xf32>
    %13 = tpu.matmul %12, %11, %cst_5 {dimension_numbers = #tpu.dot_dimension_numbers<[1], [1], [0], [0], [0, 0, 1, 0], [], []>} : vector<128x128xf32>, vector<128x128xf32>, vector<128x128xf32> -> vector<128x128xf32>
    %c0_6 = arith.constant 0 : index
    %c0_7 = arith.constant 0 : index
    %14 = vector.load %arg6[%c0_6, %c0_7] : memref<128x1xf32, #tpu.memory_space<vmem>>, vector<128x1xf32>
    %15 = math.exp %13 : vector<128x128xf32>
    %cst_8 = arith.constant dense<0.000000e+00> : vector<128xf32>
    %16 = vector.multi_reduction <add>, %15, %cst_8 [1] : vector<128x128xf32> to vector<128xf32>
    %17 = vector.shape_cast %16 : vector<128xf32> to vector<128x1xf32>
    %18 = arith.addf %14, %17 : vector<128x1xf32>
    %c0_9 = arith.constant 0 : index
    %c0_10 = arith.constant 0 : index
    %19 = vector.load %arg6[%c0_9, %c0_10] : memref<128x1xf32, #tpu.memory_space<vmem>>, vector<128x1xf32>
    tpu.vector_store %arg6[%c0_9, %c0_10], %18 {strides = array<i32>} : memref<128x1xf32, #tpu.memory_space<vmem>>, vector<128x1xf32>,
    %c0_11 = arith.constant 0 : index
    %c0_12 = arith.constant 0 : index
    %20 = vector.load %arg7[%c0_11, %c0_12] : memref<128x1xf32, #tpu.memory_space<vmem>>, vector<128x1xf32>
    %cst_13 = arith.constant dense<0.000000e+00> : vector<128xf32>
    %21 = vector.multi_reduction <add>, %13, %cst_13 [1] : vector<128x128xf32> to vector<128xf32>
    %22 = vector.shape_cast %21 : vector<128xf32> to vector<128x1xf32>
    %23 = arith.addf %20, %22 : vector<128x1xf32>
    %c0_14 = arith.constant 0 : index
    %c0_15 = arith.constant 0 : index
    %24 = vector.load %arg7[%c0_14, %c0_15] : memref<128x1xf32, #tpu.memory_space<vmem>>, vector<128x1xf32>
    tpu.vector_store %arg7[%c0_14, %c0_15], %23 {strides = array<i32>} : memref<128x1xf32, #tpu.memory_space<vmem>>, vector<128x1xf32>,
    %c0_16 = arith.constant 0 : index
    %c0_17 = arith.constant 0 : index
    %25 = vector.load %arg8[%c0_16, %c0_17] : memref<128x1xf32, #tpu.memory_space<vmem>>, vector<128x1xf32>
    %26 = arith.mulf %13, %13 : vector<128x128xf32>
    %cst_18 = arith.constant dense<0.000000e+00> : vector<128xf32>
    %27 = vector.multi_reduction <add>, %26, %cst_18 [1] : vector<128x128xf32> to vector<128xf32>
    %28 = vector.shape_cast %27 : vector<128xf32> to vector<128x1xf32>
    %29 = arith.addf %25, %28 : vector<128x1xf32>
    %c0_19 = arith.constant 0 : index
    %c0_20 = arith.constant 0 : index
    %30 = vector.load %arg8[%c0_19, %c0_20] : memref<128x1xf32, #tpu.memory_space<vmem>>, vector<128x1xf32>
    tpu.vector_store %arg8[%c0_19, %c0_20], %29 {strides = array<i32>} : memref<128x1xf32, #tpu.memory_space<vmem>>, vector<128x1xf32>,
    %31 = arith.cmpi eq, %arg0, %arg1 : i32
    %32 = arith.extui %31 : i1 to i32
    %c0_i32_21 = arith.constant 0 : i32
    %33 = arith.cmpi ne, %32, %c0_i32_21 : i32
    scf.if %33 {
      %37 = arith.mulf %12, %11 : vector<128x128xf32>
      %cst_23 = arith.constant dense<0.000000e+00> : vector<128xf32>
      %38 = vector.multi_reduction <add>, %37, %cst_23 [1] : vector<128x128xf32> to vector<128xf32>
      %39 = vector.shape_cast %38 : vector<128xf32> to vector<128x1xf32>
      %c0_24 = arith.constant 0 : index
      %c0_25 = arith.constant 0 : index
      %40 = vector.load %arg9[%c0_24, %c0_25] : memref<128x1xf32, #tpu.memory_space<vmem>>, vector<128x1xf32>
      tpu.vector_store %arg9[%c0_24, %c0_25], %39 {strides = array<i32>} : memref<128x1xf32, #tpu.memory_space<vmem>>, vector<128x1xf32>,
    } else {
    }
    %c1_i32 = arith.constant 1 : i32
    %34 = arith.cmpi eq, %arg1, %c1_i32 : i32
    %35 = arith.extui %34 : i1 to i32
    %c0_i32_22 = arith.constant 0 : i32
    %36 = arith.cmpi ne, %35, %c0_i32_22 : i32
    scf.if %36 {
      %c0_23 = arith.constant 0 : index
      %c0_24 = arith.constant 0 : index
      %37 = vector.load %arg6[%c0_23, %c0_24] : memref<128x1xf32, #tpu.memory_space<vmem>>, vector<128x1xf32>
      %38 = math.log %37 : vector<128x1xf32>
      %c0_25 = arith.constant 0 : index
      %c0_26 = arith.constant 0 : index
      %39 = vector.load %arg9[%c0_25, %c0_26] : memref<128x1xf32, #tpu.memory_space<vmem>>, vector<128x1xf32>
      %c0_27 = arith.constant 0 : index
      %c0_28 = arith.constant 0 : index
      %40 = vector.load %arg8[%c0_27, %c0_28] : memref<128x1xf32, #tpu.memory_space<vmem>>, vector<128x1xf32>
      %c0_29 = arith.constant 0 : index
      %c0_30 = arith.constant 0 : index
      %41 = vector.load %arg7[%c0_29, %c0_30] : memref<128x1xf32, #tpu.memory_space<vmem>>, vector<128x1xf32>
      %42 = arith.mulf %38, %41 : vector<128x1xf32>
      %43 = arith.subf %40, %42 : vector<128x1xf32>
      %cst_31 = arith.constant 0.000000e+00 : f32
      %44 = vector.broadcast %cst_31 : f32 to vector<128x1xf32>
      %45 = arith.subf %44, %43 : vector<128x1xf32>
      %46 = arith.mulf %39, %39 : vector<128x1xf32>
      %47 = arith.mulf %38, %39 : vector<128x1xf32>
      %48 = arith.subf %46, %47 : vector<128x1xf32>
      %49 = arith.addf %45, %48 : vector<128x1xf32>
      %c0_32 = arith.constant 0 : index
      %c0_33 = arith.constant 0 : index
      %50 = vector.load %arg4[%c0_32, %c0_33] : memref<128x1xf32, #tpu.memory_space<vmem>>, vector<128x1xf32>
      tpu.vector_store %arg4[%c0_32, %c0_33], %49 {strides = array<i32>} : memref<128x1xf32, #tpu.memory_space<vmem>>, vector<128x1xf32>,
    } else {
    }
    return
  }
  func.func @transform_0(%arg0: i32, %arg1: i32) -> (i32, i32) {
    %c0_i32 = arith.constant 0 : i32
    %c0_i32_0 = arith.constant 0 : i32
    return %arg0, %c0_i32 : i32, i32
  }
  func.func @transform_1(%arg0: i32, %arg1: i32) -> (i32, i32) {
    %c0_i32 = arith.constant 0 : i32
    %c0_i32_0 = arith.constant 0 : i32
    return %arg1, %c0_i32 : i32, i32
  }
  func.func @transform_2(%arg0: i32, %arg1: i32) -> (i32, i32) {
    %c0_i32 = arith.constant 0 : i32
    %c0_i32_0 = arith.constant 0 : i32
    return %arg0, %c0_i32 : i32, i32
  }
}

</mosaic_0001>

<llo_original>
// kernel: tpu_custom_call.1
$region0: #{tpu_custom_call.1}
  #allocation0 [shape = 'u32[]', space=smem, size = 0x4, offset = 0x4, fixed_abs, tag = 'smem constant byte address 0x4 - core index']
  #allocation1 [shape = 'u32[144,128]{1,0:T(1,128)}', space=vmem, size = 0x12000, scoped, tag = 'internal scratch']
  #allocation2 [shape = 'f32[128,128]{1,0:T(8,128)}', space=vmem, size = 0x10000, scoped, tag = 'scratch operand']
  #allocation3 [shape = 'f32[128,1]{1,0:T(8,128)}', space=vmem, size = 0x10000, scoped, tag = 'scratch operand']
  #allocation4 [shape = 'f32[128,1]{1,0:T(8,128)}', space=vmem, size = 0x10000, scoped, tag = 'scratch operand']
  #allocation5 [shape = 'f32[128,1]{1,0:T(8,128)}', space=vmem, size = 0x10000, scoped, tag = 'scratch operand']
  #allocation6 [shape = 'f32[128,1]{1,0:T(8,128)}', space=vmem, size = 0x10000, scoped, tag = 'scratch operand']
  %s0 = inlined_call_operand.hbm [shape: f32[256,128], index: 0, kind: input, shape index: {}]
  %s1 = inlined_call_operand.hbm [shape: f32[256,128], index: 1, kind: input, shape index: {}]
  %s2 = inlined_call_operand.vmem [shape: f32[256,1], index: 2, kind: output, shape index: {}]
  %s3 = sld [smem:[#allocation0]]
  $region61: #{tpu_custom_call.1} parent=0
    _
  %s5 = ssub.s32 1, %s3
  %s6 = scalar_select 0, %s5, %s3
  $region1: #{tpu_custom_call.1} parent=0
    #allocation7 [shape = 'u8[131072]{0}', space=vmem, size = 0x20000, scoped, tag = 'input window, operand 0']
    #allocation8 [shape = 's32[2]{0}', space=sflag, size = 0x8, scoped, tag = 'scoped memory for tpu_custom_call.1']
    #allocation9 [shape = 'u8[131072]{0}', space=vmem, size = 0x20000, scoped, tag = 'input window, operand 1']
    #allocation10 [shape = 's32[2]{0}', space=sflag, size = 0x8, scoped, tag = 'scoped memory for tpu_custom_call.1']
    %7 = vsyncpa [#allocation8], 0
    %s8 = scalar_lea.sflag [#allocation8], 1
    %9 = vsyncpa %s8, 0
    %10 = vsyncpa [#allocation10], 0
    %s11 = scalar_lea.sflag [#allocation10], 1
    %12 = vsyncpa %s11, 0
    loop: start=0, step=1, limit=6
    $region2: #{tpu_custom_call.1} parent=1 // loop_pre_header
      _
    $region3: #{tpu_custom_call.1} parent=1 // loop_header
      %s14 = sphi 0, %s18
      %p15 = scmp.ge.s32.totalorder %s14, 6
      %s21 = sphi 0, %s33
      %s22 = sphi 0, %s29
      %s23 = sphi 0, %s21
      %s24 = sphi 0, %s22
      %s25 = sphi 0, %s23
      %s26 = sphi 0, %s24
      %s36 = sphi 0, %s38
      %s39 = sphi 0, %s36
      %s40 = sphi 0, %s39
      %s56 = sphi 0, %s40
      %s62 = sphi 0, %s64
      %s65 = sphi 0, %s62
      %s66 = sphi 0, %s65
      %s82 = sphi 0, %s66
      %s88 = sphi 0, %s90
      %s91 = sphi 0, %s88
      %s92 = sphi 0, %s91
      %s108 = sphi 0, %s92
    $region4: #{tpu_custom_call.1} parent=1 // loop_header_branch
      %17 = sbr.rel (%p15) target = $region8
    $region5: #{tpu_custom_call.1} parent=1 // loop_body
      %s19 = ssub.s32 %s14, 1
      %s20 = ssub.s32 %s14, 2
      %s27 = sadd.s32 1, %s22
      %p28 = scmp.ge.s32.totalorder %s27, 2
      %s29 = scalar_select %p28, 0, %s27
      %s30 = sadd.s32 1, %s21
      %s31 = scalar_select %p28, %s30, %s21
      %p32 = scmp.ge.s32.totalorder %s31, 2
      %s33 = scalar_select %p32, 0, %s31
      %s34 = ssub.s32 %s21, %s33
      %p35 = scmp.eq.s32.totalorder %s34, 0
      %s37 = sadd.s32 %s36, 1
      %s38 = scalar_select %p35, %s36, %s37
      %p41 = pneg %p35
      %p42 = scmp.eq.s32.totalorder %s14, 3
      %p43 = por %p41, %p42
      %p44 = scmp.ne.s32.totalorder %s36, %s39
      %p45 = scmp.eq.s32.totalorder %s14, 0
      %p46 = por %p44, %p45
      %p47 = scmp.ne.s32.totalorder %s36, %s39
      %p48 = scmp.eq.s32.totalorder %s19, 3
      %p49 = por %p47, %p48
      %p50 = scmp.ne.s32.totalorder %s39, %s40
      %p51 = scmp.eq.s32.totalorder %s19, 0
      %p52 = por %p50, %p51
      %p53 = scmp.ne.s32.totalorder %s39, %s40
      %p54 = scmp.eq.s32.totalorder %s20, 3
      %p55 = por %p53, %p54
      %p57 = scmp.ne.s32.totalorder %s40, %s56
      %p58 = scmp.eq.s32.totalorder %s20, 0
      %p59 = por %p57, %p58
      %s60 = ssub.s32 %s22, %s29
      %p61 = scmp.eq.s32.totalorder %s60, 0
      %s63 = sadd.s32 %s62, 1
      %s64 = scalar_select %p61, %s62, %s63
      %p67 = pneg %p61
      %p68 = scmp.eq.s32.totalorder %s14, 3
      %p69 = por %p67, %p68
      %p70 = scmp.ne.s32.totalorder %s62, %s65
      %p71 = scmp.eq.s32.totalorder %s14, 0
      %p72 = por %p70, %p71
      %p73 = scmp.ne.s32.totalorder %s62, %s65
      %p74 = scmp.eq.s32.totalorder %s19, 3
      %p75 = por %p73, %p74
      %p76 = scmp.ne.s32.totalorder %s65, %s66
      %p77 = scmp.eq.s32.totalorder %s19, 0
      %p78 = por %p76, %p77
      %p79 = scmp.ne.s32.totalorder %s65, %s66
      %p80 = scmp.eq.s32.totalorder %s20, 3
      %p81 = por %p79, %p80
      %p83 = scmp.ne.s32.totalorder %s66, %s82
      %p84 = scmp.eq.s32.totalorder %s20, 0
      %p85 = por %p83, %p84
      %s86 = ssub.s32 %s21, %s33
      %p87 = scmp.eq.s32.totalorder %s86, 0
      %s89 = sadd.s32 %s88, 1
      %s90 = scalar_select %p87, %s88, %s89
      %p93 = pneg %p87
      %p94 = scmp.eq.s32.totalorder %s14, 3
      %p95 = por %p93, %p94
      %p96 = scmp.ne.s32.totalorder %s88, %s91
      %p97 = scmp.eq.s32.totalorder %s14, 0
      %p98 = por %p96, %p97
      %p99 = scmp.ne.s32.totalorder %s88, %s91
      %p100 = scmp.eq.s32.totalorder %s19, 3
      %p101 = por %p99, %p100
      %p102 = scmp.ne.s32.totalorder %s91, %s92
      %p103 = scmp.eq.s32.totalorder %s19, 0
      %p104 = por %p102, %p103
      %p105 = scmp.ne.s32.totalorder %s91, %s92
      %p106 = scmp.eq.s32.totalorder %s20, 3
      %p107 = por %p105, %p106
      %p109 = scmp.ne.s32.totalorder %s92, %s108
      %p110 = scmp.eq.s32.totalorder %s20, 0
      %p111 = por %p109, %p110
      %p112 = scmp.le.s32.totalorder 1, %s14
      %p113 = scmp.lt.s32.totalorder %s14, 5
      %p114 = pnand %p112, %p113
      %p115 = pneg %p114
      // Predicated region
      $region9: #{tpu_custom_call.1} parent=5 // pred_check
        _
      $region10: #{tpu_custom_call.1} parent=5 // pred_check_branch
        %117 = sbr.rel (%p114) target = $region12
      $region11: #{tpu_custom_call.1} parent=5 // pred_region
        %s118 = ssub.s32 %s14, 1
      $region12: #{tpu_custom_call.1} parent=5 // pred_fallthru
        _
      %p119 = scmp.lt.s32.totalorder %s14, 4
      // Predicated region
      $region13: #{tpu_custom_call.1} parent=5 // pred_check
        %p120 = pneg %p119
      $region14: #{tpu_custom_call.1} parent=5 // pred_check_branch
        %122 = sbr.rel (%p120) target = $region16
      $region15: #{tpu_custom_call.1} parent=5 // pred_region
        // Predicated region
        $region17: #{tpu_custom_call.1} parent=15 // pred_check
          %p123 = pneg %p46
        $region18: #{tpu_custom_call.1} parent=15 // pred_check_branch
          %125 = sbr.rel (%p123) target = $region20
        $region19: #{tpu_custom_call.1} parent=15 // pred_region
          %s126 = sand.u32 %s36, 1
          %s127 = scalar_lea.sflag [#allocation8], %s126
          %s128 = sand.u32 %s36, 1
          %s129 = smul.addr %s128, 128
          %s130 = scalar_lea.vmem [#allocation7], %s129
          %s131 = smul.u32 16, %s21
          %s133 = ssub.s32 2048, 2048
          %134 = vsyncadd %s127, %s133
          %s135 = smul.addr %s131, 128
          %s136 = scalar_lea.hbm %s0, %s135
          %s137 = sshll.u32 %s130, 4
          %s138 = int_to_ptr.vmem [resolvable:$true] %s137
          %143 = dma.hbm_to_vmem [thread:$0]  %s136, 2048, %s138, %s127, 128, 128, 8
        $region20: #{tpu_custom_call.1} parent=15 // pred_fallthru
          _
        // Predicated region
        $region21: #{tpu_custom_call.1} parent=15 // pred_check
          %p144 = pneg %p72
        $region22: #{tpu_custom_call.1} parent=15 // pred_check_branch
          %146 = sbr.rel (%p144) target = $region24
        $region23: #{tpu_custom_call.1} parent=15 // pred_region
          %s147 = sand.u32 %s62, 1
          %s148 = scalar_lea.sflag [#allocation10], %s147
          %s149 = sand.u32 %s62, 1
          %s150 = smul.addr %s149, 128
          %s151 = scalar_lea.vmem [#allocation9], %s150
          %s152 = smul.u32 16, %s22
          %s154 = ssub.s32 2048, 2048
          %155 = vsyncadd %s148, %s154
          %s156 = smul.addr %s152, 128
          %s157 = scalar_lea.hbm %s1, %s156
          %s158 = sshll.u32 %s151, 4
          %s159 = int_to_ptr.vmem [resolvable:$true] %s158
          %164 = dma.hbm_to_vmem [thread:$0]  %s157, 2048, %s159, %s148, 128, 128, 8
        $region24: #{tpu_custom_call.1} parent=15 // pred_fallthru
          _
      $region16: #{tpu_custom_call.1} parent=5 // pred_fallthru
        _
      %p165 = scmp.le.s32.totalorder 1, %s14
      %p166 = scmp.lt.s32.totalorder %s14, 5
      %p167 = pnand %p165, %p166
      %p168 = pneg %p167
      // Predicated region
      $region25: #{tpu_custom_call.1} parent=5 // pred_check
        _
      $region26: #{tpu_custom_call.1} parent=5 // pred_check_branch
        %170 = sbr.rel (%p167) target = $region28
      $region27: #{tpu_custom_call.1} parent=5 // pred_region
        %s171 = ssub.s32 %s14, 1
        %s172 = sand.u32 %s39, 1
        %s173 = scalar_lea.sflag [#allocation8], %s172
        %s174 = sand.u32 %s39, 1
        %s175 = smul.addr %s174, 128
        %s176 = scalar_lea.vmem [#allocation7], %s175
        // Predicated region
        $region29: #{tpu_custom_call.1} parent=27 // pred_check
          %p177 = pneg %p52
        $region30: #{tpu_custom_call.1} parent=27 // pred_check_branch
          %179 = sbr.rel (%p177) target = $region32
        $region31: #{tpu_custom_call.1} parent=27 // pred_region
          %180 = dma.done %s173, 2048
        $region32: #{tpu_custom_call.1} parent=27 // pred_fallthru
          _
        %s181 = sand.u32 %s65, 1
        %s182 = scalar_lea.sflag [#allocation10], %s181
        %s183 = sand.u32 %s65, 1
        %s184 = smul.addr %s183, 128
        %s185 = scalar_lea.vmem [#allocation9], %s184
        // Predicated region
        $region33: #{tpu_custom_call.1} parent=27 // pred_check
          %p186 = pneg %p78
        $region34: #{tpu_custom_call.1} parent=27 // pred_check_branch
          %188 = sbr.rel (%p186) target = $region36
        $region35: #{tpu_custom_call.1} parent=27 // pred_region
          %189 = dma.done %s182, 2048
        $region36: #{tpu_custom_call.1} parent=27 // pred_fallthru
          _
        %s190 = sand.u32 %s39, 1
        %s191 = scalar_lea.sflag [#allocation8], %s190
        %s192 = sand.u32 %s39, 1
        %s193 = smul.addr %s192, 128
        %s194 = scalar_lea.vmem [#allocation7], %s193
        %p195 = pneg %p52
        %p196 = pneg %p49
        %s197 = sand.u32 %s65, 1
        %s198 = scalar_lea.sflag [#allocation10], %s197
        %s199 = sand.u32 %s65, 1
        %s200 = smul.addr %s199, 128
        %s201 = scalar_lea.vmem [#allocation9], %s200
        %p202 = pneg %p78
        %p203 = pneg %p75
        %p204 = pneg %p104
        %p205 = pneg %p101
        %s206 = smul.u32 16, %s23
        %p207 = scmp.lt.s32.totalorder %s206, 31
        %s208 = scalar_select %p207, %s206, 31
        %s209 = smul.addr %s208, 8
        %s210 = scalar_lea.vmem %s2, %s209
        %s211 = smul.u32 16, %s23
        %s212 = smul.u32 16, %s24
        %s213 = smul.u32 16, %s23
        %p214 = scmp.lt.s32.totalorder %s213, 31
        %s215 = scalar_select %p214, %s213, 31
        %s216 = smul.addr %s215, 8
        %s217 = scalar_lea.vmem %s2, %s216
        %s218 = smul.u32 16, %s23
        %p219 = scmp.eq.s32.totalorder %s24, 0
        // Predicated region
        $region37: #{tpu_custom_call.1} parent=27 // pred_check
          %p220 = pneg %p219
        $region38: #{tpu_custom_call.1} parent=27 // pred_check_branch
          %222 = sbr.rel (%p220) target = $region40
        $region39: #{tpu_custom_call.1} parent=27 // pred_region
          %v223 = vld [vmem:[%s176] sm:$0xff]
          %v224 = vld [vmem:[%s176 + $0x8] sm:$0xff]
          %v225 = vld [vmem:[%s176 + $0x10] sm:$0xff]
          %v226 = vld [vmem:[%s176 + $0x18] sm:$0xff]
          %v227 = vld [vmem:[%s176 + $0x20] sm:$0xff]
          %v228 = vld [vmem:[%s176 + $0x28] sm:$0xff]
          %v229 = vld [vmem:[%s176 + $0x30] sm:$0xff]
          %v230 = vld [vmem:[%s176 + $0x38] sm:$0xff]
          %v231 = vld [vmem:[%s176 + $0x40] sm:$0xff]
          %v232 = vld [vmem:[%s176 + $0x48] sm:$0xff]
          %v233 = vld [vmem:[%s176 + $0x50] sm:$0xff]
          %v234 = vld [vmem:[%s176 + $0x58] sm:$0xff]
          %v235 = vld [vmem:[%s176 + $0x60] sm:$0xff]
          %v236 = vld [vmem:[%s176 + $0x68] sm:$0xff]
          %v237 = vld [vmem:[%s176 + $0x70] sm:$0xff]
          %v238 = vld [vmem:[%s176 + $0x78] sm:$0xff]
          %v239 = vmul.f32 %v223, %v223
          %v240 = vmul.f32 %v224, %v224
          %v241 = vmul.f32 %v225, %v225
          %v242 = vmul.f32 %v226, %v226
          %v243 = vmul.f32 %v227, %v227
          %v244 = vmul.f32 %v228, %v228
          %v245 = vmul.f32 %v229, %v229
          %v246 = vmul.f32 %v230, %v230
          %v247 = vmul.f32 %v231, %v231
          %v248 = vmul.f32 %v232, %v232
          %v249 = vmul.f32 %v233, %v233
          %v250 = vmul.f32 %v234, %v234
          %v251 = vmul.f32 %v235, %v235
          %v252 = vmul.f32 %v236, %v236
          %v253 = vmul.f32 %v237, %v237
          %v254 = vmul.f32 %v238, %v238
          %255 = vadd.xlane.f32.xlu0 %v239
          %v256 = vpop.xlane.xlu0 %255
          %257 = vadd.xlane.f32.xlu0 %v240
          %v258 = vpop.xlane.xlu0 %257
          %259 = vadd.xlane.f32.xlu0 %v241
          %v260 = vpop.xlane.xlu0 %259
          %261 = vadd.xlane.f32.xlu0 %v242
          %v262 = vpop.xlane.xlu0 %261
          %263 = vadd.xlane.f32.xlu0 %v243
          %v264 = vpop.xlane.xlu0 %263
          %265 = vadd.xlane.f32.xlu0 %v244
          %v266 = vpop.xlane.xlu0 %265
          %267 = vadd.xlane.f32.xlu0 %v245
          %v268 = vpop.xlane.xlu0 %267
          %269 = vadd.xlane.f32.xlu0 %v246
          %v270 = vpop.xlane.xlu0 %269
          %271 = vadd.xlane.f32.xlu0 %v247
          %v272 = vpop.xlane.xlu0 %271
          %273 = vadd.xlane.f32.xlu0 %v248
          %v274 = vpop.xlane.xlu0 %273
          %275 = vadd.xlane.f32.xlu0 %v249
          %v276 = vpop.xlane.xlu0 %275
          %277 = vadd.xlane.f32.xlu0 %v250
          %v278 = vpop.xlane.xlu0 %277
          %279 = vadd.xlane.f32.xlu0 %v251
          %v280 = vpop.xlane.xlu0 %279
          %281 = vadd.xlane.f32.xlu0 %v252
          %v282 = vpop.xlane.xlu0 %281
          %283 = vadd.xlane.f32.xlu0 %v253
          %v284 = vpop.xlane.xlu0 %283
          %285 = vadd.xlane.f32.xlu0 %v254
          %v286 = vpop.xlane.xlu0 %285
          %v287 = vmax.f32 %v256, 1e-24
          %v288 = vmax.f32 %v258, 1e-24
          %v289 = vmax.f32 %v260, 1e-24
          %v290 = vmax.f32 %v262, 1e-24
          %v291 = vmax.f32 %v264, 1e-24
          %v292 = vmax.f32 %v266, 1e-24
          %v293 = vmax.f32 %v268, 1e-24
          %v294 = vmax.f32 %v270, 1e-24
          %v295 = vmax.f32 %v272, 1e-24
          %v296 = vmax.f32 %v274, 1e-24
          %v297 = vmax.f32 %v276, 1e-24
          %v298 = vmax.f32 %v278, 1e-24
          %v299 = vmax.f32 %v280, 1e-24
          %v300 = vmax.f32 %v282, 1e-24
          %v301 = vmax.f32 %v284, 1e-24
          %v302 = vmax.f32 %v286, 1e-24
          %v303 = vrsqrt.pop %v287
          %v304 = vrsqrt.pop %v288
          %v305 = vrsqrt.pop %v289
          %v306 = vrsqrt.pop %v290
          %v307 = vrsqrt.pop %v291
          %v308 = vrsqrt.pop %v292
          %v309 = vrsqrt.pop %v293
          %v310 = vrsqrt.pop %v294
          %v311 = vrsqrt.pop %v295
          %v312 = vrsqrt.pop %v296
          %v313 = vrsqrt.pop %v297
          %v314 = vrsqrt.pop %v298
          %v315 = vrsqrt.pop %v299
          %v316 = vrsqrt.pop %v300
          %v317 = vrsqrt.pop %v301
          %v318 = vrsqrt.pop %v302
          %v319 = vmul.f32 %v303, 14.285714
          %v320 = vmul.f32 %v304, 14.285714
          %v321 = vmul.f32 %v305, 14.285714
          %v322 = vmul.f32 %v306, 14.285714
          %v323 = vmul.f32 %v307, 14.285714
          %v324 = vmul.f32 %v308, 14.285714
          %v325 = vmul.f32 %v309, 14.285714
          %v326 = vmul.f32 %v310, 14.285714
          %v327 = vmul.f32 %v311, 14.285714
          %v328 = vmul.f32 %v312, 14.285714
          %v329 = vmul.f32 %v313, 14.285714
          %v330 = vmul.f32 %v314, 14.285714
          %v331 = vmul.f32 %v315, 14.285714
          %v332 = vmul.f32 %v316, 14.285714
          %v333 = vmul.f32 %v317, 14.285714
          %v334 = vmul.f32 %v318, 14.285714
          %v335 = vmul.f32 %v223, %v319
          %v336 = vmul.f32 %v224, %v320
          %v337 = vmul.f32 %v225, %v321
          %v338 = vmul.f32 %v226, %v322
          %v339 = vmul.f32 %v227, %v323
          %v340 = vmul.f32 %v228, %v324
          %v341 = vmul.f32 %v229, %v325
          %v342 = vmul.f32 %v230, %v326
          %v343 = vmul.f32 %v231, %v327
          %v344 = vmul.f32 %v232, %v328
          %v345 = vmul.f32 %v233, %v329
          %v346 = vmul.f32 %v234, %v330
          %v347 = vmul.f32 %v235, %v331
          %v348 = vmul.f32 %v236, %v332
          %v349 = vmul.f32 %v237, %v333
          %v350 = vmul.f32 %v238, %v334
          %351 = vst [vmem:[#allocation2] sm:$0xff] %v335
          %352 = vst [vmem:[#allocation2 + $0x8] sm:$0xff] %v336
          %353 = vst [vmem:[#allocation2 + $0x10] sm:$0xff] %v337
          %354 = vst [vmem:[#allocation2 + $0x18] sm:$0xff] %v338
          %355 = vst [vmem:[#allocation2 + $0x20] sm:$0xff] %v339
          %356 = vst [vmem:[#allocation2 + $0x28] sm:$0xff] %v340
          %357 = vst [vmem:[#allocation2 + $0x30] sm:$0xff] %v341
          %358 = vst [vmem:[#allocation2 + $0x38] sm:$0xff] %v342
          %359 = vst [vmem:[#allocation2 + $0x40] sm:$0xff] %v343
          %360 = vst [vmem:[#allocation2 + $0x48] sm:$0xff] %v344
          %361 = vst [vmem:[#allocation2 + $0x50] sm:$0xff] %v345
          %362 = vst [vmem:[#allocation2 + $0x58] sm:$0xff] %v346
          %363 = vst [vmem:[#allocation2 + $0x60] sm:$0xff] %v347
          %364 = vst [vmem:[#allocation2 + $0x68] sm:$0xff] %v348
          %365 = vst [vmem:[#allocation2 + $0x70] sm:$0xff] %v349
          %366 = vst [vmem:[#allocation2 + $0x78] sm:$0xff] %v350
          %vm367 = vcmask 7168
          %368 = vst.msk [vmem:[#allocation3] sm:$0xff] %vm367, 0.0
          %369 = vst.msk [vmem:[#allocation3 + $0x8] sm:$0xff] %vm367, 0.0
          %370 = vst.msk [vmem:[#allocation3 + $0x10] sm:$0xff] %vm367, 0.0
          %371 = vst.msk [vmem:[#allocation3 + $0x18] sm:$0xff] %vm367, 0.0
          %372 = vst.msk [vmem:[#allocation3 + $0x20] sm:$0xff] %vm367, 0.0
          %373 = vst.msk [vmem:[#allocation3 + $0x28] sm:$0xff] %vm367, 0.0
          %374 = vst.msk [vmem:[#allocation3 + $0x30] sm:$0xff] %vm367, 0.0
          %375 = vst.msk [vmem:[#allocation3 + $0x38] sm:$0xff] %vm367, 0.0
          %376 = vst.msk [vmem:[#allocation3 + $0x40] sm:$0xff] %vm367, 0.0
          %377 = vst.msk [vmem:[#allocation3 + $0x48] sm:$0xff] %vm367, 0.0
          %378 = vst.msk [vmem:[#allocation3 + $0x50] sm:$0xff] %vm367, 0.0
          %379 = vst.msk [vmem:[#allocation3 + $0x58] sm:$0xff] %vm367, 0.0
          %380 = vst.msk [vmem:[#allocation3 + $0x60] sm:$0xff] %vm367, 0.0
          %381 = vst.msk [vmem:[#allocation3 + $0x68] sm:$0xff] %vm367, 0.0
          %382 = vst.msk [vmem:[#allocation3 + $0x70] sm:$0xff] %vm367, 0.0
          %383 = vst.msk [vmem:[#allocation3 + $0x78] sm:$0xff] %vm367, 0.0
          %384 = vst.msk [vmem:[#allocation4] sm:$0xff] %vm367, 0.0
          %385 = vst.msk [vmem:[#allocation4 + $0x8] sm:$0xff] %vm367, 0.0
          %386 = vst.msk [vmem:[#allocation4 + $0x10] sm:$0xff] %vm367, 0.0
          %387 = vst.msk [vmem:[#allocation4 + $0x18] sm:$0xff] %vm367, 0.0
          %388 = vst.msk [vmem:[#allocation4 + $0x20] sm:$0xff] %vm367, 0.0
          %389 = vst.msk [vmem:[#allocation4 + $0x28] sm:$0xff] %vm367, 0.0
          %390 = vst.msk [vmem:[#allocation4 + $0x30] sm:$0xff] %vm367, 0.0
          %391 = vst.msk [vmem:[#allocation4 + $0x38] sm:$0xff] %vm367, 0.0
          %392 = vst.msk [vmem:[#allocation4 + $0x40] sm:$0xff] %vm367, 0.0
          %393 = vst.msk [vmem:[#allocation4 + $0x48] sm:$0xff] %vm367, 0.0
          %394 = vst.msk [vmem:[#allocation4 + $0x50] sm:$0xff] %vm367, 0.0
          %395 = vst.msk [vmem:[#allocation4 + $0x58] sm:$0xff] %vm367, 0.0
          %396 = vst.msk [vmem:[#allocation4 + $0x60] sm:$0xff] %vm367, 0.0
          %397 = vst.msk [vmem:[#allocation4 + $0x68] sm:$0xff] %vm367, 0.0
          %398 = vst.msk [vmem:[#allocation4 + $0x70] sm:$0xff] %vm367, 0.0
          %399 = vst.msk [vmem:[#allocation4 + $0x78] sm:$0xff] %vm367, 0.0
          %400 = vst.msk [vmem:[#allocation5] sm:$0xff] %vm367, 0.0
          %401 = vst.msk [vmem:[#allocation5 + $0x8] sm:$0xff] %vm367, 0.0
          %402 = vst.msk [vmem:[#allocation5 + $0x10] sm:$0xff] %vm367, 0.0
          %403 = vst.msk [vmem:[#allocation5 + $0x18] sm:$0xff] %vm367, 0.0
          %404 = vst.msk [vmem:[#allocation5 + $0x20] sm:$0xff] %vm367, 0.0
          %405 = vst.msk [vmem:[#allocation5 + $0x28] sm:$0xff] %vm367, 0.0
          %406 = vst.msk [vmem:[#allocation5 + $0x30] sm:$0xff] %vm367, 0.0
          %407 = vst.msk [vmem:[#allocation5 + $0x38] sm:$0xff] %vm367, 0.0
          %408 = vst.msk [vmem:[#allocation5 + $0x40] sm:$0xff] %vm367, 0.0
          %409 = vst.msk [vmem:[#allocation5 + $0x48] sm:$0xff] %vm367, 0.0
          %410 = vst.msk [vmem:[#allocation5 + $0x50] sm:$0xff] %vm367, 0.0
          %411 = vst.msk [vmem:[#allocation5 + $0x58] sm:$0xff] %vm367, 0.0
          %412 = vst.msk [vmem:[#allocation5 + $0x60] sm:$0xff] %vm367, 0.0
          %413 = vst.msk [vmem:[#allocation5 + $0x68] sm:$0xff] %vm367, 0.0
          %414 = vst.msk [vmem:[#allocation5 + $0x70] sm:$0xff] %vm367, 0.0
          %415 = vst.msk [vmem:[#allocation5 + $0x78] sm:$0xff] %vm367, 0.0
          %416 = vst.msk [vmem:[#allocation6] sm:$0xff] %vm367, 0.0
          %417 = vst.msk [vmem:[#allocation6 + $0x8] sm:$0xff] %vm367, 0.0
          %418 = vst.msk [vmem:[#allocation6 + $0x10] sm:$0xff] %vm367, 0.0
          %419 = vst.msk [vmem:[#allocation6 + $0x18] sm:$0xff] %vm367, 0.0
          %420 = vst.msk [vmem:[#allocation6 + $0x20] sm:$0xff] %vm367, 0.0
          %421 = vst.msk [vmem:[#allocation6 + $0x28] sm:$0xff] %vm367, 0.0
          %422 = vst.msk [vmem:[#allocation6 + $0x30] sm:$0xff] %vm367, 0.0
          %423 = vst.msk [vmem:[#allocation6 + $0x38] sm:$0xff] %vm367, 0.0
          %424 = vst.msk [vmem:[#allocation6 + $0x40] sm:$0xff] %vm367, 0.0
          %425 = vst.msk [vmem:[#allocation6 + $0x48] sm:$0xff] %vm367, 0.0
          %426 = vst.msk [vmem:[#allocation6 + $0x50] sm:$0xff] %vm367, 0.0
          %427 = vst.msk [vmem:[#allocation6 + $0x58] sm:$0xff] %vm367, 0.0
          %428 = vst.msk [vmem:[#allocation6 + $0x60] sm:$0xff] %vm367, 0.0
          %429 = vst.msk [vmem:[#allocation6 + $0x68] sm:$0xff] %vm367, 0.0
          %430 = vst.msk [vmem:[#allocation6 + $0x70] sm:$0xff] %vm367, 0.0
          %431 = vst.msk [vmem:[#allocation6 + $0x78] sm:$0xff] %vm367, 0.0
        $region40: #{tpu_custom_call.1} parent=27 // pred_fallthru
          _
        %v432 = vld [vmem:[%s185] sm:$0xff]
        %v433 = vld [vmem:[%s185 + $0x8] sm:$0xff]
        %v434 = vld [vmem:[%s185 + $0x10] sm:$0xff]
        %v435 = vld [vmem:[%s185 + $0x18] sm:$0xff]
        %v436 = vld [vmem:[%s185 + $0x20] sm:$0xff]
        %v437 = vld [vmem:[%s185 + $0x28] sm:$0xff]
        %v438 = vld [vmem:[%s185 + $0x30] sm:$0xff]
        %v439 = vld [vmem:[%s185 + $0x38] sm:$0xff]
        %v440 = vld [vmem:[%s185 + $0x40] sm:$0xff]
        %v441 = vld [vmem:[%s185 + $0x48] sm:$0xff]
        %v442 = vld [vmem:[%s185 + $0x50] sm:$0xff]
        %v443 = vld [vmem:[%s185 + $0x58] sm:$0xff]
        %v444 = vld [vmem:[%s185 + $0x60] sm:$0xff]
        %v445 = vld [vmem:[%s185 + $0x68] sm:$0xff]
        %v446 = vld [vmem:[%s185 + $0x70] sm:$0xff]
        %v447 = vld [vmem:[%s185 + $0x78] sm:$0xff]
        %v448 = vmul.f32 %v432, %v432
        %v449 = vmul.f32 %v433, %v433
        %v450 = vmul.f32 %v434, %v434
        %v451 = vmul.f32 %v435, %v435
        %v452 = vmul.f32 %v436, %v436
        %v453 = vmul.f32 %v437, %v437
        %v454 = vmul.f32 %v438, %v438
        %v455 = vmul.f32 %v439, %v439
        %v456 = vmul.f32 %v440, %v440
        %v457 = vmul.f32 %v441, %v441
        %v458 = vmul.f32 %v442, %v442
        %v459 = vmul.f32 %v443, %v443
        %v460 = vmul.f32 %v444, %v444
        %v461 = vmul.f32 %v445, %v445
        %v462 = vmul.f32 %v446, %v446
        %v463 = vmul.f32 %v447, %v447
        %464 = vadd.xlane.f32.xlu0 %v448
        %v465 = vpop.xlane.xlu0 %464
        %466 = vadd.xlane.f32.xlu0 %v449
        %v467 = vpop.xlane.xlu0 %466
        %468 = vadd.xlane.f32.xlu0 %v450
        %v469 = vpop.xlane.xlu0 %468
        %470 = vadd.xlane.f32.xlu0 %v451
        %v471 = vpop.xlane.xlu0 %470
        %472 = vadd.xlane.f32.xlu0 %v452
        %v473 = vpop.xlane.xlu0 %472
        %474 = vadd.xlane.f32.xlu0 %v453
        %v475 = vpop.xlane.xlu0 %474
        %476 = vadd.xlane.f32.xlu0 %v454
        %v477 = vpop.xlane.xlu0 %476
        %478 = vadd.xlane.f32.xlu0 %v455
        %v479 = vpop.xlane.xlu0 %478
        %480 = vadd.xlane.f32.xlu0 %v456
        %v481 = vpop.xlane.xlu0 %480
        %482 = vadd.xlane.f32.xlu0 %v457
        %v483 = vpop.xlane.xlu0 %482
        %484 = vadd.xlane.f32.xlu0 %v458
        %v485 = vpop.xlane.xlu0 %484
        %486 = vadd.xlane.f32.xlu0 %v459
        %v487 = vpop.xlane.xlu0 %486
        %488 = vadd.xlane.f32.xlu0 %v460
        %v489 = vpop.xlane.xlu0 %488
        %490 = vadd.xlane.f32.xlu0 %v461
        %v491 = vpop.xlane.xlu0 %490
        %492 = vadd.xlane.f32.xlu0 %v462
        %v493 = vpop.xlane.xlu0 %492
        %494 = vadd.xlane.f32.xlu0 %v463
        %v495 = vpop.xlane.xlu0 %494
        %v496 = vmax.f32 %v465, 1e-24
        %v497 = vmax.f32 %v467, 1e-24
        %v498 = vmax.f32 %v469, 1e-24
        %v499 = vmax.f32 %v471, 1e-24
        %v500 = vmax.f32 %v473, 1e-24
        %v501 = vmax.f32 %v475, 1e-24
        %v502 = vmax.f32 %v477, 1e-24
        %v503 = vmax.f32 %v479, 1e-24
        %v504 = vmax.f32 %v481, 1e-24
        %v505 = vmax.f32 %v483, 1e-24
        %v506 = vmax.f32 %v485, 1e-24
        %v507 = vmax.f32 %v487, 1e-24
        %v508 = vmax.f32 %v489, 1e-24
        %v509 = vmax.f32 %v491, 1e-24
        %v510 = vmax.f32 %v493, 1e-24
        %v511 = vmax.f32 %v495, 1e-24
        %v512 = vrsqrt.pop %v496
        %v513 = vrsqrt.pop %v497
        %v514 = vrsqrt.pop %v498
        %v515 = vrsqrt.pop %v499
        %v516 = vrsqrt.pop %v500
        %v517 = vrsqrt.pop %v501
        %v518 = vrsqrt.pop %v502
        %v519 = vrsqrt.pop %v503
        %v520 = vrsqrt.pop %v504
        %v521 = vrsqrt.pop %v505
        %v522 = vrsqrt.pop %v506
        %v523 = vrsqrt.pop %v507
        %v524 = vrsqrt.pop %v508
        %v525 = vrsqrt.pop %v509
        %v526 = vrsqrt.pop %v510
        %v527 = vrsqrt.pop %v511
        %v528 = vmul.f32 %v432, %v512
        %v529 = vmul.f32 %v433, %v513
        %v530 = vmul.f32 %v434, %v514
        %v531 = vmul.f32 %v435, %v515
        %v532 = vmul.f32 %v436, %v516
        %v533 = vmul.f32 %v437, %v517
        %v534 = vmul.f32 %v438, %v518
        %v535 = vmul.f32 %v439, %v519
        %v536 = vmul.f32 %v440, %v520
        %v537 = vmul.f32 %v441, %v521
        %v538 = vmul.f32 %v442, %v522
        %v539 = vmul.f32 %v443, %v523
        %v540 = vmul.f32 %v444, %v524
        %v541 = vmul.f32 %v445, %v525
        %v542 = vmul.f32 %v446, %v526
        %v543 = vmul.f32 %v447, %v527
        %v544 = vld [vmem:[#allocation2] sm:$0xff]
        %v545 = vld [vmem:[#allocation2 + $0x8] sm:$0xff]
        %v546 = vld [vmem:[#allocation2 + $0x10] sm:$0xff]
        %v547 = vld [vmem:[#allocation2 + $0x18] sm:$0xff]
        %v548 = vld [vmem:[#allocation2 + $0x20] sm:$0xff]
        %v549 = vld [vmem:[#allocation2 + $0x28] sm:$0xff]
        %v550 = vld [vmem:[#allocation2 + $0x30] sm:$0xff]
        %v551 = vld [vmem:[#allocation2 + $0x38] sm:$0xff]
        %v552 = vld [vmem:[#allocation2 + $0x40] sm:$0xff]
        %v553 = vld [vmem:[#allocation2 + $0x48] sm:$0xff]
        %v554 = vld [vmem:[#allocation2 + $0x50] sm:$0xff]
        %v555 = vld [vmem:[#allocation2 + $0x58] sm:$0xff]
        %v556 = vld [vmem:[#allocation2 + $0x60] sm:$0xff]
        %v557 = vld [vmem:[#allocation2 + $0x68] sm:$0xff]
        %v558 = vld [vmem:[#allocation2 + $0x70] sm:$0xff]
        %v559 = vld [vmem:[#allocation2 + $0x78] sm:$0xff]
        %560 = vmatprep.subr.mxu0 0.0
        %561 = vmatpush1.xpose.msra.mxu0 %v528
        %562 = vmatprep.subr.mxu0 0.0
        %563 = vmatpush1.xpose.msra.mxu0 %v529
        %564 = vmatprep.subr.mxu0 0.0
        %565 = vmatpush1.xpose.msra.mxu0 %v530
        %566 = vmatprep.subr.mxu0 0.0
        %567 = vmatpush1.xpose.msra.mxu0 %v531
        %568 = vmatprep.subr.mxu0 0.0
        %569 = vmatpush1.xpose.msra.mxu0 %v532
        %570 = vmatprep.subr.mxu0 0.0
        %571 = vmatpush1.xpose.msra.mxu0 %v533
        %572 = vmatprep.subr.mxu0 0.0
        %573 = vmatpush1.xpose.msra.mxu0 %v534
        %574 = vmatprep.subr.mxu0 0.0
        %575 = vmatpush1.xpose.msra.mxu0 %v535
        %576 = vmatprep.subr.mxu0 0.0
        %577 = vmatpush1.xpose.msra.mxu0 %v536
        %578 = vmatprep.subr.mxu0 0.0
        %579 = vmatpush1.xpose.msra.mxu0 %v537
        %580 = vmatprep.subr.mxu0 0.0
        %581 = vmatpush1.xpose.msra.mxu0 %v538
        %582 = vmatprep.subr.mxu0 0.0
        %583 = vmatpush1.xpose.msra.mxu0 %v539
        %584 = vmatprep.subr.mxu0 0.0
        %585 = vmatpush1.xpose.msra.mxu0 %v540
        %586 = vmatprep.subr.mxu0 0.0
        %587 = vmatpush1.xpose.msra.mxu0 %v541
        %588 = vmatprep.subr.mxu0 0.0
        %589 = vmatpush1.xpose.msra.mxu0 %v542
        %590 = vmatprep.subr.mxu0 0.0
        %591 = vmatpush1.xpose.msra.mxu0 %v543
        %592 = vmatprep.subr.mxu0 0.0
        %593 = vmatpush1.xpose.msra.mxu0 0.0
        %594 = vmatprep.subr.mxu0 0.0
        %595 = vmatpush1.xpose.msra.mxu0 0.0
        %596 = vmatprep.subr.mxu0 0.0
        %597 = vmatpush1.xpose.msra.mxu0 0.0
        %598 = vmatprep.subr.mxu0 0.0
        %599 = vmatpush1.xpose.msra.mxu0 0.0
        %600 = vmatprep.subr.mxu0 0.0
        %601 = vmatpush1.xpose.msra.mxu0 0.0
        %602 = vmatprep.subr.mxu0 0.0
        %603 = vmatpush1.xpose.msra.mxu0 0.0
        %604 = vmatprep.subr.mxu0 0.0
        %605 = vmatpush1.xpose.msra.mxu0 0.0
        %606 = vmatprep.subr.mxu0 0.0
        %607 = vmatpush1.xpose.msra.mxu0 0.0
        %608 = vmatprep.subr.mxu0 0.0
        %609 = vmatpush1.xpose.msra.mxu0 0.0
        %610 = vmatprep.subr.mxu0 0.0
        %611 = vmatpush1.xpose.msra.mxu0 0.0
        %612 = vmatprep.subr.mxu0 0.0
        %613 = vmatpush1.xpose.msra.mxu0 0.0
        %614 = vmatprep.subr.mxu0 0.0
        %615 = vmatpush1.xpose.msra.mxu0 0.0
        %616 = vmatprep.subr.mxu0 0.0
        %617 = vmatpush1.xpose.msra.mxu0 0.0
        %618 = vmatprep.subr.mxu0 0.0
        %619 = vmatpush1.xpose.msra.mxu0 0.0
        %620 = vmatprep.subr.mxu0 0.0
        %621 = vmatpush1.xpose.msra.mxu0 0.0
        %622 = vmatprep.subr.mxu0 0.0
        %623 = vmatpush1.xpose.msra.mxu0 0.0
        %624 = vmatprep.mubr.f32.mxu0 0.0
        %625 = vmatmul.mubr.f32.gmra.mrb[0].mxu0 %v544
        %v626 = vpop.f32.mrb[0].mxu0
        %v627 = vadd.f32 0.0, %v626
        %v628 = vpop.f32.mrb[0].mxu0
        %629 = vmatprep.mubr.f32.mxu0 0.0
        %630 = vmatmul.mubr.f32.gmra.mrb[0].mxu0 %v545
        %v631 = vpop.f32.mrb[0].mxu0
        %v632 = vadd.f32 0.0, %v631
        %v633 = vpop.f32.mrb[0].mxu0
        %634 = vmatprep.mubr.f32.mxu0 0.0
        %635 = vmatmul.mubr.f32.gmra.mrb[0].mxu0 %v546
        %v636 = vpop.f32.mrb[0].mxu0
        %v637 = vadd.f32 0.0, %v636
        %v638 = vpop.f32.mrb[0].mxu0
        %639 = vmatprep.mubr.f32.mxu0 0.0
        %640 = vmatmul.mubr.f32.gmra.mrb[0].mxu0 %v547
        %v641 = vpop.f32.mrb[0].mxu0
        %v642 = vadd.f32 0.0, %v641
        %v643 = vpop.f32.mrb[0].mxu0
        %644 = vmatprep.mubr.f32.mxu0 0.0
        %645 = vmatmul.mubr.f32.gmra.mrb[0].mxu0 %v548
        %v646 = vpop.f32.mrb[0].mxu0
        %v647 = vadd.f32 0.0, %v646
        %v648 = vpop.f32.mrb[0].mxu0
        %649 = vmatprep.mubr.f32.mxu0 0.0
        %650 = vmatmul.mubr.f32.gmra.mrb[0].mxu0 %v549
        %v651 = vpop.f32.mrb[0].mxu0
        %v652 = vadd.f32 0.0, %v651
        %v653 = vpop.f32.mrb[0].mxu0
        %654 = vmatprep.mubr.f32.mxu0 0.0
        %655 = vmatmul.mubr.f32.gmra.mrb[0].mxu0 %v550
        %v656 = vpop.f32.mrb[0].mxu0
        %v657 = vadd.f32 0.0, %v656
        %v658 = vpop.f32.mrb[0].mxu0
        %659 = vmatprep.mubr.f32.mxu0 0.0
        %660 = vmatmul.mubr.f32.gmra.mrb[0].mxu0 %v551
        %v661 = vpop.f32.mrb[0].mxu0
        %v662 = vadd.f32 0.0, %v661
        %v663 = vpop.f32.mrb[0].mxu0
        %664 = vmatprep.mubr.f32.mxu0 0.0
        %665 = vmatmul.mubr.f32.gmra.mrb[0].mxu0 %v552
        %v666 = vpop.f32.mrb[0].mxu0
        %v667 = vadd.f32 0.0, %v666
        %v668 = vpop.f32.mrb[0].mxu0
        %669 = vmatprep.mubr.f32.mxu0 0.0
        %670 = vmatmul.mubr.f32.gmra.mrb[0].mxu0 %v553
        %v671 = vpop.f32.mrb[0].mxu0
        %v672 = vadd.f32 0.0, %v671
        %v673 = vpop.f32.mrb[0].mxu0
        %674 = vmatprep.mubr.f32.mxu0 0.0
        %675 = vmatmul.mubr.f32.gmra.mrb[0].mxu0 %v554
        %v676 = vpop.f32.mrb[0].mxu0
        %v677 = vadd.f32 0.0, %v676
        %v678 = vpop.f32.mrb[0].mxu0
        %679 = vmatprep.mubr.f32.mxu0 0.0
        %680 = vmatmul.mubr.f32.gmra.mrb[0].mxu0 %v555
        %v681 = vpop.f32.mrb[0].mxu0
        %v682 = vadd.f32 0.0, %v681
        %v683 = vpop.f32.mrb[0].mxu0
        %684 = vmatprep.mubr.f32.mxu0 0.0
        %685 = vmatmul.mubr.f32.gmra.mrb[0].mxu0 %v556
        %v686 = vpop.f32.mrb[0].mxu0
        %v687 = vadd.f32 0.0, %v686
        %v688 = vpop.f32.mrb[0].mxu0
        %689 = vmatprep.mubr.f32.mxu0 0.0
        %690 = vmatmul.mubr.f32.gmra.mrb[0].mxu0 %v557
        %v691 = vpop.f32.mrb[0].mxu0
        %v692 = vadd.f32 0.0, %v691
        %v693 = vpop.f32.mrb[0].mxu0
        %694 = vmatprep.mubr.f32.mxu0 0.0
        %695 = vmatmul.mubr.f32.gmra.mrb[0].mxu0 %v558
        %v696 = vpop.f32.mrb[0].mxu0
        %v697 = vadd.f32 0.0, %v696
        %v698 = vpop.f32.mrb[0].mxu0
        %699 = vmatprep.mubr.f32.mxu0 0.0
        %700 = vmatmul.mubr.f32.gmra.mrb[0].mxu0 %v559
        %v701 = vpop.f32.mrb[0].mxu0
        %v702 = vadd.f32 0.0, %v701
        %v703 = vpop.f32.mrb[0].mxu0
        %704 = vdwg.mxu0
        %v705 = vld [vmem:[#allocation3] sm:$0xff]
        %v706 = vld [vmem:[#allocation3 + $0x8] sm:$0xff]
        %v707 = vld [vmem:[#allocation3 + $0x10] sm:$0xff]
        %v708 = vld [vmem:[#allocation3 + $0x18] sm:$0xff]
        %v709 = vld [vmem:[#allocation3 + $0x20] sm:$0xff]
        %v710 = vld [vmem:[#allocation3 + $0x28] sm:$0xff]
        %v711 = vld [vmem:[#allocation3 + $0x30] sm:$0xff]
        %v712 = vld [vmem:[#allocation3 + $0x38] sm:$0xff]
        %v713 = vld [vmem:[#allocation3 + $0x40] sm:$0xff]
        %v714 = vld [vmem:[#allocation3 + $0x48] sm:$0xff]
        %v715 = vld [vmem:[#allocation3 + $0x50] sm:$0xff]
        %v716 = vld [vmem:[#allocation3 + $0x58] sm:$0xff]
        %v717 = vld [vmem:[#allocation3 + $0x60] sm:$0xff]
        %v718 = vld [vmem:[#allocation3 + $0x68] sm:$0xff]
        %v719 = vld [vmem:[#allocation3 + $0x70] sm:$0xff]
        %v720 = vld [vmem:[#allocation3 + $0x78] sm:$0xff]
        %v721 = vmul.f32 %v627, 1.442695
        %v722 = vpow.pop %v721
        %v723 = vmul.f32 %v632, 1.442695
        %v724 = vpow.pop %v723
        %v725 = vmul.f32 %v637, 1.442695
        %v726 = vpow.pop %v725
        %v727 = vmul.f32 %v642, 1.442695
        %v728 = vpow.pop %v727
        %v729 = vmul.f32 %v647, 1.442695
        %v730 = vpow.pop %v729
        %v731 = vmul.f32 %v652, 1.442695
        %v732 = vpow.pop %v731
        %v733 = vmul.f32 %v657, 1.442695
        %v734 = vpow.pop %v733
        %v735 = vmul.f32 %v662, 1.442695
        %v736 = vpow.pop %v735
        %v737 = vmul.f32 %v667, 1.442695
        %v738 = vpow.pop %v737
        %v739 = vmul.f32 %v672, 1.442695
        %v740 = vpow.pop %v739
        %v741 = vmul.f32 %v677, 1.442695
        %v742 = vpow.pop %v741
        %v743 = vmul.f32 %v682, 1.442695
        %v744 = vpow.pop %v743
        %v745 = vmul.f32 %v687, 1.442695
        %v746 = vpow.pop %v745
        %v747 = vmul.f32 %v692, 1.442695
        %v748 = vpow.pop %v747
        %v749 = vmul.f32 %v697, 1.442695
        %v750 = vpow.pop %v749
        %v751 = vmul.f32 %v702, 1.442695
        %v752 = vpow.pop %v751
        %753 = vadd.xlane.f32.xlu0 %v722
        %v754 = vpop.xlane.xlu0 %753
        %755 = vadd.xlane.f32.xlu0 %v724
        %v756 = vpop.xlane.xlu0 %755
        %757 = vadd.xlane.f32.xlu0 %v726
        %v758 = vpop.xlane.xlu0 %757
        %759 = vadd.xlane.f32.xlu0 %v728
        %v760 = vpop.xlane.xlu0 %759
        %761 = vadd.xlane.f32.xlu0 %v730
        %v762 = vpop.xlane.xlu0 %761
        %763 = vadd.xlane.f32.xlu0 %v732
        %v764 = vpop.xlane.xlu0 %763
        %765 = vadd.xlane.f32.xlu0 %v734
        %v766 = vpop.xlane.xlu0 %765
        %767 = vadd.xlane.f32.xlu0 %v736
        %v768 = vpop.xlane.xlu0 %767
        %769 = vadd.xlane.f32.xlu0 %v738
        %v770 = vpop.xlane.xlu0 %769
        %771 = vadd.xlane.f32.xlu0 %v740
        %v772 = vpop.xlane.xlu0 %771
        %773 = vadd.xlane.f32.xlu0 %v742
        %v774 = vpop.xlane.xlu0 %773
        %775 = vadd.xlane.f32.xlu0 %v744
        %v776 = vpop.xlane.xlu0 %775
        %777 = vadd.xlane.f32.xlu0 %v746
        %v778 = vpop.xlane.xlu0 %777
        %779 = vadd.xlane.f32.xlu0 %v748
        %v780 = vpop.xlane.xlu0 %779
        %781 = vadd.xlane.f32.xlu0 %v750
        %v782 = vpop.xlane.xlu0 %781
        %783 = vadd.xlane.f32.xlu0 %v752
        %v784 = vpop.xlane.xlu0 %783
        %v785 = vadd.f32 %v705, %v754
        %v786 = vadd.f32 %v706, %v756
        %v787 = vadd.f32 %v707, %v758
        %v788 = vadd.f32 %v708, %v760
        %v789 = vadd.f32 %v709, %v762
        %v790 = vadd.f32 %v710, %v764
        %v791 = vadd.f32 %v711, %v766
        %v792 = vadd.f32 %v712, %v768
        %v793 = vadd.f32 %v713, %v770
        %v794 = vadd.f32 %v714, %v772
        %v795 = vadd.f32 %v715, %v774
        %v796 = vadd.f32 %v716, %v776
        %v797 = vadd.f32 %v717, %v778
        %v798 = vadd.f32 %v718, %v780
        %v799 = vadd.f32 %v719, %v782
        %v800 = vadd.f32 %v720, %v784
        %vm801 = vcmask 7168
        %802 = vst.msk [vmem:[#allocation3] sm:$0xff] %vm801, %v785
        %803 = vst.msk [vmem:[#allocation3 + $0x8] sm:$0xff] %vm801, %v786
        %804 = vst.msk [vmem:[#allocation3 + $0x10] sm:$0xff] %vm801, %v787
        %805 = vst.msk [vmem:[#allocation3 + $0x18] sm:$0xff] %vm801, %v788
        %806 = vst.msk [vmem:[#allocation3 + $0x20] sm:$0xff] %vm801, %v789
        %807 = vst.msk [vmem:[#allocation3 + $0x28] sm:$0xff] %vm801, %v790
        %808 = vst.msk [vmem:[#allocation3 + $0x30] sm:$0xff] %vm801, %v791
        %809 = vst.msk [vmem:[#allocation3 + $0x38] sm:$0xff] %vm801, %v792
        %810 = vst.msk [vmem:[#allocation3 + $0x40] sm:$0xff] %vm801, %v793
        %811 = vst.msk [vmem:[#allocation3 + $0x48] sm:$0xff] %vm801, %v794
        %812 = vst.msk [vmem:[#allocation3 + $0x50] sm:$0xff] %vm801, %v795
        %813 = vst.msk [vmem:[#allocation3 + $0x58] sm:$0xff] %vm801, %v796
        %814 = vst.msk [vmem:[#allocation3 + $0x60] sm:$0xff] %vm801, %v797
        %815 = vst.msk [vmem:[#allocation3 + $0x68] sm:$0xff] %vm801, %v798
        %816 = vst.msk [vmem:[#allocation3 + $0x70] sm:$0xff] %vm801, %v799
        %817 = vst.msk [vmem:[#allocation3 + $0x78] sm:$0xff] %vm801, %v800
        %v818 = vld [vmem:[#allocation4] sm:$0xff]
        %v819 = vld [vmem:[#allocation4 + $0x8] sm:$0xff]
        %v820 = vld [vmem:[#allocation4 + $0x10] sm:$0xff]
        %v821 = vld [vmem:[#allocation4 + $0x18] sm:$0xff]
        %v822 = vld [vmem:[#allocation4 + $0x20] sm:$0xff]
        %v823 = vld [vmem:[#allocation4 + $0x28] sm:$0xff]
        %v824 = vld [vmem:[#allocation4 + $0x30] sm:$0xff]
        %v825 = vld [vmem:[#allocation4 + $0x38] sm:$0xff]
        %v826 = vld [vmem:[#allocation4 + $0x40] sm:$0xff]
        %v827 = vld [vmem:[#allocation4 + $0x48] sm:$0xff]
        %v828 = vld [vmem:[#allocation4 + $0x50] sm:$0xff]
        %v829 = vld [vmem:[#allocation4 + $0x58] sm:$0xff]
        %v830 = vld [vmem:[#allocation4 + $0x60] sm:$0xff]
        %v831 = vld [vmem:[#allocation4 + $0x68] sm:$0xff]
        %v832 = vld [vmem:[#allocation4 + $0x70] sm:$0xff]
        %v833 = vld [vmem:[#allocation4 + $0x78] sm:$0xff]
        %834 = vadd.xlane.f32.xlu0 %v627
        %v835 = vpop.xlane.xlu0 %834
        %836 = vadd.xlane.f32.xlu0 %v632
        %v837 = vpop.xlane.xlu0 %836
        %838 = vadd.xlane.f32.xlu0 %v637
        %v839 = vpop.xlane.xlu0 %838
        %840 = vadd.xlane.f32.xlu0 %v642
        %v841 = vpop.xlane.xlu0 %840
        %842 = vadd.xlane.f32.xlu0 %v647
        %v843 = vpop.xlane.xlu0 %842
        %844 = vadd.xlane.f32.xlu0 %v652
        %v845 = vpop.xlane.xlu0 %844
        %846 = vadd.xlane.f32.xlu0 %v657
        %v847 = vpop.xlane.xlu0 %846
        %848 = vadd.xlane.f32.xlu0 %v662
        %v849 = vpop.xlane.xlu0 %848
        %850 = vadd.xlane.f32.xlu0 %v667
        %v851 = vpop.xlane.xlu0 %850
        %852 = vadd.xlane.f32.xlu0 %v672
        %v853 = vpop.xlane.xlu0 %852
        %854 = vadd.xlane.f32.xlu0 %v677
        %v855 = vpop.xlane.xlu0 %854
        %856 = vadd.xlane.f32.xlu0 %v682
        %v857 = vpop.xlane.xlu0 %856
        %858 = vadd.xlane.f32.xlu0 %v687
        %v859 = vpop.xlane.xlu0 %858
        %860 = vadd.xlane.f32.xlu0 %v692
        %v861 = vpop.xlane.xlu0 %860
        %862 = vadd.xlane.f32.xlu0 %v697
        %v863 = vpop.xlane.xlu0 %862
        %864 = vadd.xlane.f32.xlu0 %v702
        %v865 = vpop.xlane.xlu0 %864
        %v866 = vadd.f32 %v818, %v835
        %v867 = vadd.f32 %v819, %v837
        %v868 = vadd.f32 %v820, %v839
        %v869 = vadd.f32 %v821, %v841
        %v870 = vadd.f32 %v822, %v843
        %v871 = vadd.f32 %v823, %v845
        %v872 = vadd.f32 %v824, %v847
        %v873 = vadd.f32 %v825, %v849
        %v874 = vadd.f32 %v826, %v851
        %v875 = vadd.f32 %v827, %v853
        %v876 = vadd.f32 %v828, %v855
        %v877 = vadd.f32 %v829, %v857
        %v878 = vadd.f32 %v830, %v859
        %v879 = vadd.f32 %v831, %v861
        %v880 = vadd.f32 %v832, %v863
        %v881 = vadd.f32 %v833, %v865
        %882 = vst.msk [vmem:[#allocation4] sm:$0xff] %vm801, %v866
        %883 = vst.msk [vmem:[#allocation4 + $0x8] sm:$0xff] %vm801, %v867
        %884 = vst.msk [vmem:[#allocation4 + $0x10] sm:$0xff] %vm801, %v868
        %885 = vst.msk [vmem:[#allocation4 + $0x18] sm:$0xff] %vm801, %v869
        %886 = vst.msk [vmem:[#allocation4 + $0x20] sm:$0xff] %vm801, %v870
        %887 = vst.msk [vmem:[#allocation4 + $0x28] sm:$0xff] %vm801, %v871
        %888 = vst.msk [vmem:[#allocation4 + $0x30] sm:$0xff] %vm801, %v872
        %889 = vst.msk [vmem:[#allocation4 + $0x38] sm:$0xff] %vm801, %v873
        %890 = vst.msk [vmem:[#allocation4 + $0x40] sm:$0xff] %vm801, %v874
        %891 = vst.msk [vmem:[#allocation4 + $0x48] sm:$0xff] %vm801, %v875
        %892 = vst.msk [vmem:[#allocation4 + $0x50] sm:$0xff] %vm801, %v876
        %893 = vst.msk [vmem:[#allocation4 + $0x58] sm:$0xff] %vm801, %v877
        %894 = vst.msk [vmem:[#allocation4 + $0x60] sm:$0xff] %vm801, %v878
        %895 = vst.msk [vmem:[#allocation4 + $0x68] sm:$0xff] %vm801, %v879
        %896 = vst.msk [vmem:[#allocation4 + $0x70] sm:$0xff] %vm801, %v880
        %897 = vst.msk [vmem:[#allocation4 + $0x78] sm:$0xff] %vm801, %v881
        %v898 = vld [vmem:[#allocation5] sm:$0xff]
        %v899 = vld [vmem:[#allocation5 + $0x8] sm:$0xff]
        %v900 = vld [vmem:[#allocation5 + $0x10] sm:$0xff]
        %v901 = vld [vmem:[#allocation5 + $0x18] sm:$0xff]
        %v902 = vld [vmem:[#allocation5 + $0x20] sm:$0xff]
        %v903 = vld [vmem:[#allocation5 + $0x28] sm:$0xff]
        %v904 = vld [vmem:[#allocation5 + $0x30] sm:$0xff]
        %v905 = vld [vmem:[#allocation5 + $0x38] sm:$0xff]
        %v906 = vld [vmem:[#allocation5 + $0x40] sm:$0xff]
        %v907 = vld [vmem:[#allocation5 + $0x48] sm:$0xff]
        %v908 = vld [vmem:[#allocation5 + $0x50] sm:$0xff]
        %v909 = vld [vmem:[#allocation5 + $0x58] sm:$0xff]
        %v910 = vld [vmem:[#allocation5 + $0x60] sm:$0xff]
        %v911 = vld [vmem:[#allocation5 + $0x68] sm:$0xff]
        %v912 = vld [vmem:[#allocation5 + $0x70] sm:$0xff]
        %v913 = vld [vmem:[#allocation5 + $0x78] sm:$0xff]
        %v914 = vmul.f32 %v627, %v627
        %v915 = vmul.f32 %v632, %v632
        %v916 = vmul.f32 %v637, %v637
        %v917 = vmul.f32 %v642, %v642
        %v918 = vmul.f32 %v647, %v647
        %v919 = vmul.f32 %v652, %v652
        %v920 = vmul.f32 %v657, %v657
        %v921 = vmul.f32 %v662, %v662
        %v922 = vmul.f32 %v667, %v667
        %v923 = vmul.f32 %v672, %v672
        %v924 = vmul.f32 %v677, %v677
        %v925 = vmul.f32 %v682, %v682
        %v926 = vmul.f32 %v687, %v687
        %v927 = vmul.f32 %v692, %v692
        %v928 = vmul.f32 %v697, %v697
        %v929 = vmul.f32 %v702, %v702
        %930 = vadd.xlane.f32.xlu0 %v914
        %v931 = vpop.xlane.xlu0 %930
        %932 = vadd.xlane.f32.xlu0 %v915
        %v933 = vpop.xlane.xlu0 %932
        %934 = vadd.xlane.f32.xlu0 %v916
        %v935 = vpop.xlane.xlu0 %934
        %936 = vadd.xlane.f32.xlu0 %v917
        %v937 = vpop.xlane.xlu0 %936
        %938 = vadd.xlane.f32.xlu0 %v918
        %v939 = vpop.xlane.xlu0 %938
        %940 = vadd.xlane.f32.xlu0 %v919
        %v941 = vpop.xlane.xlu0 %940
        %942 = vadd.xlane.f32.xlu0 %v920
        %v943 = vpop.xlane.xlu0 %942
        %944 = vadd.xlane.f32.xlu0 %v921
        %v945 = vpop.xlane.xlu0 %944
        %946 = vadd.xlane.f32.xlu0 %v922
        %v947 = vpop.xlane.xlu0 %946
        %948 = vadd.xlane.f32.xlu0 %v923
        %v949 = vpop.xlane.xlu0 %948
        %950 = vadd.xlane.f32.xlu0 %v924
        %v951 = vpop.xlane.xlu0 %950
        %952 = vadd.xlane.f32.xlu0 %v925
        %v953 = vpop.xlane.xlu0 %952
        %954 = vadd.xlane.f32.xlu0 %v926
        %v955 = vpop.xlane.xlu0 %954
        %956 = vadd.xlane.f32.xlu0 %v927
        %v957 = vpop.xlane.xlu0 %956
        %958 = vadd.xlane.f32.xlu0 %v928
        %v959 = vpop.xlane.xlu0 %958
        %960 = vadd.xlane.f32.xlu0 %v929
        %v961 = vpop.xlane.xlu0 %960
        %v962 = vadd.f32 %v898, %v931
        %v963 = vadd.f32 %v899, %v933
        %v964 = vadd.f32 %v900, %v935
        %v965 = vadd.f32 %v901, %v937
        %v966 = vadd.f32 %v902, %v939
        %v967 = vadd.f32 %v903, %v941
        %v968 = vadd.f32 %v904, %v943
        %v969 = vadd.f32 %v905, %v945
        %v970 = vadd.f32 %v906, %v947
        %v971 = vadd.f32 %v907, %v949
        %v972 = vadd.f32 %v908, %v951
        %v973 = vadd.f32 %v909, %v953
        %v974 = vadd.f32 %v910, %v955
        %v975 = vadd.f32 %v911, %v957
        %v976 = vadd.f32 %v912, %v959
        %v977 = vadd.f32 %v913, %v961
        %978 = vst.msk [vmem:[#allocation5] sm:$0xff] %vm801, %v962
        %979 = vst.msk [vmem:[#allocation5 + $0x8] sm:$0xff] %vm801, %v963
        %980 = vst.msk [vmem:[#allocation5 + $0x10] sm:$0xff] %vm801, %v964
        %981 = vst.msk [vmem:[#allocation5 + $0x18] sm:$0xff] %vm801, %v965
        %982 = vst.msk [vmem:[#allocation5 + $0x20] sm:$0xff] %vm801, %v966
        %983 = vst.msk [vmem:[#allocation5 + $0x28] sm:$0xff] %vm801, %v967
        %984 = vst.msk [vmem:[#allocation5 + $0x30] sm:$0xff] %vm801, %v968
        %985 = vst.msk [vmem:[#allocation5 + $0x38] sm:$0xff] %vm801, %v969
        %986 = vst.msk [vmem:[#allocation5 + $0x40] sm:$0xff] %vm801, %v970
        %987 = vst.msk [vmem:[#allocation5 + $0x48] sm:$0xff] %vm801, %v971
        %988 = vst.msk [vmem:[#allocation5 + $0x50] sm:$0xff] %vm801, %v972
        %989 = vst.msk [vmem:[#allocation5 + $0x58] sm:$0xff] %vm801, %v973
        %990 = vst.msk [vmem:[#allocation5 + $0x60] sm:$0xff] %vm801, %v974
        %991 = vst.msk [vmem:[#allocation5 + $0x68] sm:$0xff] %vm801, %v975
        %992 = vst.msk [vmem:[#allocation5 + $0x70] sm:$0xff] %vm801, %v976
        %993 = vst.msk [vmem:[#allocation5 + $0x78] sm:$0xff] %vm801, %v977
        %p994 = scmp.eq.s32.totalorder %s23, %s24
        // Predicated region
        $region41: #{tpu_custom_call.1} parent=27 // pred_check
          %p995 = pneg %p994
        $region42: #{tpu_custom_call.1} parent=27 // pred_check_branch
          %997 = sbr.rel (%p995) target = $region44
        $region43: #{tpu_custom_call.1} parent=27 // pred_region
          %v998 = vmul.f32 %v544, %v528
          %v999 = vmul.f32 %v545, %v529
          %v1000 = vmul.f32 %v546, %v530
          %v1001 = vmul.f32 %v547, %v531
          %v1002 = vmul.f32 %v548, %v532
          %v1003 = vmul.f32 %v549, %v533
          %v1004 = vmul.f32 %v550, %v534
          %v1005 = vmul.f32 %v551, %v535
          %v1006 = vmul.f32 %v552, %v536
          %v1007 = vmul.f32 %v553, %v537
          %v1008 = vmul.f32 %v554, %v538
          %v1009 = vmul.f32 %v555, %v539
          %v1010 = vmul.f32 %v556, %v540
          %v1011 = vmul.f32 %v557, %v541
          %v1012 = vmul.f32 %v558, %v542
          %v1013 = vmul.f32 %v559, %v543
          %1014 = vadd.xlane.f32.xlu0 %v998
          %v1015 = vpop.xlane.xlu0 %1014
          %1016 = vadd.xlane.f32.xlu0 %v999
          %v1017 = vpop.xlane.xlu0 %1016
          %1018 = vadd.xlane.f32.xlu0 %v1000
          %v1019 = vpop.xlane.xlu0 %1018
          %1020 = vadd.xlane.f32.xlu0 %v1001
          %v1021 = vpop.xlane.xlu0 %1020
          %1022 = vadd.xlane.f32.xlu0 %v1002
          %v1023 = vpop.xlane.xlu0 %1022
          %1024 = vadd.xlane.f32.xlu0 %v1003
          %v1025 = vpop.xlane.xlu0 %1024
          %1026 = vadd.xlane.f32.xlu0 %v1004
          %v1027 = vpop.xlane.xlu0 %1026
          %1028 = vadd.xlane.f32.xlu0 %v1005
          %v1029 = vpop.xlane.xlu0 %1028
          %1030 = vadd.xlane.f32.xlu0 %v1006
          %v1031 = vpop.xlane.xlu0 %1030
          %1032 = vadd.xlane.f32.xlu0 %v1007
          %v1033 = vpop.xlane.xlu0 %1032
          %1034 = vadd.xlane.f32.xlu0 %v1008
          %v1035 = vpop.xlane.xlu0 %1034
          %1036 = vadd.xlane.f32.xlu0 %v1009
          %v1037 = vpop.xlane.xlu0 %1036
          %1038 = vadd.xlane.f32.xlu0 %v1010
          %v1039 = vpop.xlane.xlu0 %1038
          %1040 = vadd.xlane.f32.xlu0 %v1011
          %v1041 = vpop.xlane.xlu0 %1040
          %1042 = vadd.xlane.f32.xlu0 %v1012
          %v1043 = vpop.xlane.xlu0 %1042
          %1044 = vadd.xlane.f32.xlu0 %v1013
          %v1045 = vpop.xlane.xlu0 %1044
          %1046 = vst.msk [vmem:[#allocation6] sm:$0xff] %vm801, %v1015
          %1047 = vst.msk [vmem:[#allocation6 + $0x8] sm:$0xff] %vm801, %v1017
          %1048 = vst.msk [vmem:[#allocation6 + $0x10] sm:$0xff] %vm801, %v1019
          %1049 = vst.msk [vmem:[#allocation6 + $0x18] sm:$0xff] %vm801, %v1021
          %1050 = vst.msk [vmem:[#allocation6 + $0x20] sm:$0xff] %vm801, %v1023
          %1051 = vst.msk [vmem:[#allocation6 + $0x28] sm:$0xff] %vm801, %v1025
          %1052 = vst.msk [vmem:[#allocation6 + $0x30] sm:$0xff] %vm801, %v1027
          %1053 = vst.msk [vmem:[#allocation6 + $0x38] sm:$0xff] %vm801, %v1029
          %1054 = vst.msk [vmem:[#allocation6 + $0x40] sm:$0xff] %vm801, %v1031
          %1055 = vst.msk [vmem:[#allocation6 + $0x48] sm:$0xff] %vm801, %v1033
          %1056 = vst.msk [vmem:[#allocation6 + $0x50] sm:$0xff] %vm801, %v1035
          %1057 = vst.msk [vmem:[#allocation6 + $0x58] sm:$0xff] %vm801, %v1037
          %1058 = vst.msk [vmem:[#allocation6 + $0x60] sm:$0xff] %vm801, %v1039
          %1059 = vst.msk [vmem:[#allocation6 + $0x68] sm:$0xff] %vm801, %v1041
          %1060 = vst.msk [vmem:[#allocation6 + $0x70] sm:$0xff] %vm801, %v1043
          %1061 = vst.msk [vmem:[#allocation6 + $0x78] sm:$0xff] %vm801, %v1045
        $region44: #{tpu_custom_call.1} parent=27 // pred_fallthru
          _
        %p1062 = scmp.eq.s32.totalorder %s24, 1
        // Predicated region
        $region45: #{tpu_custom_call.1} parent=27 // pred_check
          %p1063 = pneg %p1062
        $region46: #{tpu_custom_call.1} parent=27 // pred_check_branch
          %1065 = sbr.rel (%p1063) target = $region48
        $region47: #{tpu_custom_call.1} parent=27 // pred_region
          %v1066 = vld [vmem:[#allocation3] sm:$0xff]
          %v1067 = vld [vmem:[#allocation3 + $0x8] sm:$0xff]
          %v1068 = vld [vmem:[#allocation3 + $0x10] sm:$0xff]
          %v1069 = vld [vmem:[#allocation3 + $0x18] sm:$0xff]
          %v1070 = vld [vmem:[#allocation3 + $0x20] sm:$0xff]
          %v1071 = vld [vmem:[#allocation3 + $0x28] sm:$0xff]
          %v1072 = vld [vmem:[#allocation3 + $0x30] sm:$0xff]
          %v1073 = vld [vmem:[#allocation3 + $0x38] sm:$0xff]
          %v1074 = vld [vmem:[#allocation3 + $0x40] sm:$0xff]
          %v1075 = vld [vmem:[#allocation3 + $0x48] sm:$0xff]
          %v1076 = vld [vmem:[#allocation3 + $0x50] sm:$0xff]
          %v1077 = vld [vmem:[#allocation3 + $0x58] sm:$0xff]
          %v1078 = vld [vmem:[#allocation3 + $0x60] sm:$0xff]
          %v1079 = vld [vmem:[#allocation3 + $0x68] sm:$0xff]
          %v1080 = vld [vmem:[#allocation3 + $0x70] sm:$0xff]
          %v1081 = vld [vmem:[#allocation3 + $0x78] sm:$0xff]
          %v1082 = vlog2.pop %v1066
          %v1083 = vmul.f32 %v1082, 0.6931472
          %v1084 = vlog2.pop %v1067
          %v1085 = vmul.f32 %v1084, 0.6931472
          %v1086 = vlog2.pop %v1068
          %v1087 = vmul.f32 %v1086, 0.6931472
          %v1088 = vlog2.pop %v1069
          %v1089 = vmul.f32 %v1088, 0.6931472
          %v1090 = vlog2.pop %v1070
          %v1091 = vmul.f32 %v1090, 0.6931472
          %v1092 = vlog2.pop %v1071
          %v1093 = vmul.f32 %v1092, 0.6931472
          %v1094 = vlog2.pop %v1072
          %v1095 = vmul.f32 %v1094, 0.6931472
          %v1096 = vlog2.pop %v1073
          %v1097 = vmul.f32 %v1096, 0.6931472
          %v1098 = vlog2.pop %v1074
          %v1099 = vmul.f32 %v1098, 0.6931472
          %v1100 = vlog2.pop %v1075
          %v1101 = vmul.f32 %v1100, 0.6931472
          %v1102 = vlog2.pop %v1076
          %v1103 = vmul.f32 %v1102, 0.6931472
          %v1104 = vlog2.pop %v1077
          %v1105 = vmul.f32 %v1104, 0.6931472
          %v1106 = vlog2.pop %v1078
          %v1107 = vmul.f32 %v1106, 0.6931472
          %v1108 = vlog2.pop %v1079
          %v1109 = vmul.f32 %v1108, 0.6931472
          %v1110 = vlog2.pop %v1080
          %v1111 = vmul.f32 %v1110, 0.6931472
          %v1112 = vlog2.pop %v1081
          %v1113 = vmul.f32 %v1112, 0.6931472
          %v1114 = vld [vmem:[#allocation6] sm:$0xff]
          %v1115 = vld [vmem:[#allocation6 + $0x8] sm:$0xff]
          %v1116 = vld [vmem:[#allocation6 + $0x10] sm:$0xff]
          %v1117 = vld [vmem:[#allocation6 + $0x18] sm:$0xff]
          %v1118 = vld [vmem:[#allocation6 + $0x20] sm:$0xff]
          %v1119 = vld [vmem:[#allocation6 + $0x28] sm:$0xff]
          %v1120 = vld [vmem:[#allocation6 + $0x30] sm:$0xff]
          %v1121 = vld [vmem:[#allocation6 + $0x38] sm:$0xff]
          %v1122 = vld [vmem:[#allocation6 + $0x40] sm:$0xff]
          %v1123 = vld [vmem:[#allocation6 + $0x48] sm:$0xff]
          %v1124 = vld [vmem:[#allocation6 + $0x50] sm:$0xff]
          %v1125 = vld [vmem:[#allocation6 + $0x58] sm:$0xff]
          %v1126 = vld [vmem:[#allocation6 + $0x60] sm:$0xff]
          %v1127 = vld [vmem:[#allocation6 + $0x68] sm:$0xff]
          %v1128 = vld [vmem:[#allocation6 + $0x70] sm:$0xff]
          %v1129 = vld [vmem:[#allocation6 + $0x78] sm:$0xff]
          %v1130 = vld [vmem:[#allocation5] sm:$0xff]
          %v1131 = vld [vmem:[#allocation5 + $0x8] sm:$0xff]
          %v1132 = vld [vmem:[#allocation5 + $0x10] sm:$0xff]
          %v1133 = vld [vmem:[#allocation5 + $0x18] sm:$0xff]
          %v1134 = vld [vmem:[#allocation5 + $0x20] sm:$0xff]
          %v1135 = vld [vmem:[#allocation5 + $0x28] sm:$0xff]
          %v1136 = vld [vmem:[#allocation5 + $0x30] sm:$0xff]
          %v1137 = vld [vmem:[#allocation5 + $0x38] sm:$0xff]
          %v1138 = vld [vmem:[#allocation5 + $0x40] sm:$0xff]
          %v1139 = vld [vmem:[#allocation5 + $0x48] sm:$0xff]
          %v1140 = vld [vmem:[#allocation5 + $0x50] sm:$0xff]
          %v1141 = vld [vmem:[#allocation5 + $0x58] sm:$0xff]
          %v1142 = vld [vmem:[#allocation5 + $0x60] sm:$0xff]
          %v1143 = vld [vmem:[#allocation5 + $0x68] sm:$0xff]
          %v1144 = vld [vmem:[#allocation5 + $0x70] sm:$0xff]
          %v1145 = vld [vmem:[#allocation5 + $0x78] sm:$0xff]
          %v1146 = vld [vmem:[#allocation4] sm:$0xff]
          %v1147 = vld [vmem:[#allocation4 + $0x8] sm:$0xff]
          %v1148 = vld [vmem:[#allocation4 + $0x10] sm:$0xff]
          %v1149 = vld [vmem:[#allocation4 + $0x18] sm:$0xff]
          %v1150 = vld [vmem:[#allocation4 + $0x20] sm:$0xff]
          %v1151 = vld [vmem:[#allocation4 + $0x28] sm:$0xff]
          %v1152 = vld [vmem:[#allocation4 + $0x30] sm:$0xff]
          %v1153 = vld [vmem:[#allocation4 + $0x38] sm:$0xff]
          %v1154 = vld [vmem:[#allocation4 + $0x40] sm:$0xff]
          %v1155 = vld [vmem:[#allocation4 + $0x48] sm:$0xff]
          %v1156 = vld [vmem:[#allocation4 + $0x50] sm:$0xff]
          %v1157 = vld [vmem:[#allocation4 + $0x58] sm:$0xff]
          %v1158 = vld [vmem:[#allocation4 + $0x60] sm:$0xff]
          %v1159 = vld [vmem:[#allocation4 + $0x68] sm:$0xff]
          %v1160 = vld [vmem:[#allocation4 + $0x70] sm:$0xff]
          %v1161 = vld [vmem:[#allocation4 + $0x78] sm:$0xff]
          %v1162 = vmul.f32 %v1083, %v1146
          %v1163 = vmul.f32 %v1085, %v1147
          %v1164 = vmul.f32 %v1087, %v1148
          %v1165 = vmul.f32 %v1089, %v1149
          %v1166 = vmul.f32 %v1091, %v1150
          %v1167 = vmul.f32 %v1093, %v1151
          %v1168 = vmul.f32 %v1095, %v1152
          %v1169 = vmul.f32 %v1097, %v1153
          %v1170 = vmul.f32 %v1099, %v1154
          %v1171 = vmul.f32 %v1101, %v1155
          %v1172 = vmul.f32 %v1103, %v1156
          %v1173 = vmul.f32 %v1105, %v1157
          %v1174 = vmul.f32 %v1107, %v1158
          %v1175 = vmul.f32 %v1109, %v1159
          %v1176 = vmul.f32 %v1111, %v1160
          %v1177 = vmul.f32 %v1113, %v1161
          %v1178 = vsub.f32 %v1130, %v1162
          %v1179 = vsub.f32 %v1131, %v1163
          %v1180 = vsub.f32 %v1132, %v1164
          %v1181 = vsub.f32 %v1133, %v1165
          %v1182 = vsub.f32 %v1134, %v1166
          %v1183 = vsub.f32 %v1135, %v1167
          %v1184 = vsub.f32 %v1136, %v1168
          %v1185 = vsub.f32 %v1137, %v1169
          %v1186 = vsub.f32 %v1138, %v1170
          %v1187 = vsub.f32 %v1139, %v1171
          %v1188 = vsub.f32 %v1140, %v1172
          %v1189 = vsub.f32 %v1141, %v1173
          %v1190 = vsub.f32 %v1142, %v1174
          %v1191 = vsub.f32 %v1143, %v1175
          %v1192 = vsub.f32 %v1144, %v1176
          %v1193 = vsub.f32 %v1145, %v1177
          %v1194 = vsub.f32 0.0, %v1178
          %v1195 = vsub.f32 0.0, %v1179
          %v1196 = vsub.f32 0.0, %v1180
          %v1197 = vsub.f32 0.0, %v1181
          %v1198 = vsub.f32 0.0, %v1182
          %v1199 = vsub.f32 0.0, %v1183
          %v1200 = vsub.f32 0.0, %v1184
          %v1201 = vsub.f32 0.0, %v1185
          %v1202 = vsub.f32 0.0, %v1186
          %v1203 = vsub.f32 0.0, %v1187
          %v1204 = vsub.f32 0.0, %v1188
          %v1205 = vsub.f32 0.0, %v1189
          %v1206 = vsub.f32 0.0, %v1190
          %v1207 = vsub.f32 0.0, %v1191
          %v1208 = vsub.f32 0.0, %v1192
          %v1209 = vsub.f32 0.0, %v1193
          %v1210 = vmul.f32 %v1114, %v1114
          %v1211 = vmul.f32 %v1115, %v1115
          %v1212 = vmul.f32 %v1116, %v1116
          %v1213 = vmul.f32 %v1117, %v1117
          %v1214 = vmul.f32 %v1118, %v1118
          %v1215 = vmul.f32 %v1119, %v1119
          %v1216 = vmul.f32 %v1120, %v1120
          %v1217 = vmul.f32 %v1121, %v1121
          %v1218 = vmul.f32 %v1122, %v1122
          %v1219 = vmul.f32 %v1123, %v1123
          %v1220 = vmul.f32 %v1124, %v1124
          %v1221 = vmul.f32 %v1125, %v1125
          %v1222 = vmul.f32 %v1126, %v1126
          %v1223 = vmul.f32 %v1127, %v1127
          %v1224 = vmul.f32 %v1128, %v1128
          %v1225 = vmul.f32 %v1129, %v1129
          %v1226 = vmul.f32 %v1083, %v1114
          %v1227 = vmul.f32 %v1085, %v1115
          %v1228 = vmul.f32 %v1087, %v1116
          %v1229 = vmul.f32 %v1089, %v1117
          %v1230 = vmul.f32 %v1091, %v1118
          %v1231 = vmul.f32 %v1093, %v1119
          %v1232 = vmul.f32 %v1095, %v1120
          %v1233 = vmul.f32 %v1097, %v1121
          %v1234 = vmul.f32 %v1099, %v1122
          %v1235 = vmul.f32 %v1101, %v1123
          %v1236 = vmul.f32 %v1103, %v1124
          %v1237 = vmul.f32 %v1105, %v1125
          %v1238 = vmul.f32 %v1107, %v1126
          %v1239 = vmul.f32 %v1109, %v1127
          %v1240 = vmul.f32 %v1111, %v1128
          %v1241 = vmul.f32 %v1113, %v1129
          %v1242 = vsub.f32 %v1210, %v1226
          %v1243 = vsub.f32 %v1211, %v1227
          %v1244 = vsub.f32 %v1212, %v1228
          %v1245 = vsub.f32 %v1213, %v1229
          %v1246 = vsub.f32 %v1214, %v1230
          %v1247 = vsub.f32 %v1215, %v1231
          %v1248 = vsub.f32 %v1216, %v1232
          %v1249 = vsub.f32 %v1217, %v1233
          %v1250 = vsub.f32 %v1218, %v1234
          %v1251 = vsub.f32 %v1219, %v1235
          %v1252 = vsub.f32 %v1220, %v1236
          %v1253 = vsub.f32 %v1221, %v1237
          %v1254 = vsub.f32 %v1222, %v1238
          %v1255 = vsub.f32 %v1223, %v1239
          %v1256 = vsub.f32 %v1224, %v1240
          %v1257 = vsub.f32 %v1225, %v1241
          %v1258 = vadd.f32 %v1194, %v1242
          %v1259 = vadd.f32 %v1195, %v1243
          %v1260 = vadd.f32 %v1196, %v1244
          %v1261 = vadd.f32 %v1197, %v1245
          %v1262 = vadd.f32 %v1198, %v1246
          %v1263 = vadd.f32 %v1199, %v1247
          %v1264 = vadd.f32 %v1200, %v1248
          %v1265 = vadd.f32 %v1201, %v1249
          %v1266 = vadd.f32 %v1202, %v1250
          %v1267 = vadd.f32 %v1203, %v1251
          %v1268 = vadd.f32 %v1204, %v1252
          %v1269 = vadd.f32 %v1205, %v1253
          %v1270 = vadd.f32 %v1206, %v1254
          %v1271 = vadd.f32 %v1207, %v1255
          %v1272 = vadd.f32 %v1208, %v1256
          %v1273 = vadd.f32 %v1209, %v1257
          %1274 = vst.msk [vmem:[%s217] sm:$0xff] %vm801, %v1258
          %1275 = vst.msk [vmem:[%s217 + $0x8] sm:$0xff] %vm801, %v1259
          %1276 = vst.msk [vmem:[%s217 + $0x10] sm:$0xff] %vm801, %v1260
          %1277 = vst.msk [vmem:[%s217 + $0x18] sm:$0xff] %vm801, %v1261
          %1278 = vst.msk [vmem:[%s217 + $0x20] sm:$0xff] %vm801, %v1262
          %1279 = vst.msk [vmem:[%s217 + $0x28] sm:$0xff] %vm801, %v1263
          %1280 = vst.msk [vmem:[%s217 + $0x30] sm:$0xff] %vm801, %v1264
          %1281 = vst.msk [vmem:[%s217 + $0x38] sm:$0xff] %vm801, %v1265
          %1282 = vst.msk [vmem:[%s217 + $0x40] sm:$0xff] %vm801, %v1266
          %1283 = vst.msk [vmem:[%s217 + $0x48] sm:$0xff] %vm801, %v1267
          %1284 = vst.msk [vmem:[%s217 + $0x50] sm:$0xff] %vm801, %v1268
          %1285 = vst.msk [vmem:[%s217 + $0x58] sm:$0xff] %vm801, %v1269
          %1286 = vst.msk [vmem:[%s217 + $0x60] sm:$0xff] %vm801, %v1270
          %1287 = vst.msk [vmem:[%s217 + $0x68] sm:$0xff] %vm801, %v1271
          %1288 = vst.msk [vmem:[%s217 + $0x70] sm:$0xff] %vm801, %v1272
          %1289 = vst.msk [vmem:[%s217 + $0x78] sm:$0xff] %vm801, %v1273
        $region48: #{tpu_custom_call.1} parent=27 // pred_fallthru
          _
        %s1290 = smul.u32 16, %s23
        %p1291 = scmp.lt.s32.totalorder %s1290, 31
        %s1292 = scalar_select %p1291, %s1290, 31
        %s1293 = smul.addr %s1292, 8
        %s1294 = scalar_lea.vmem %s2, %s1293
        // Predicated region
        $region49: #{tpu_custom_call.1} parent=27 // pred_check
          %p1295 = pneg %p101
        $region50: #{tpu_custom_call.1} parent=27 // pred_check_branch
          %1297 = sbr.rel (%p1295) target = $region52
        $region51: #{tpu_custom_call.1} parent=27 // pred_region
          %s1298 = smul.u32 16, %s23
        $region52: #{tpu_custom_call.1} parent=27 // pred_fallthru
          _
      $region28: #{tpu_custom_call.1} parent=5 // pred_fallthru
        _
      %p1299 = scmp.le.s32.totalorder 2, %s14
      // Predicated region
      $region53: #{tpu_custom_call.1} parent=5 // pred_check
        %p1300 = pneg %p1299
      $region54: #{tpu_custom_call.1} parent=5 // pred_check_branch
        %1302 = sbr.rel (%p1300) target = $region56
      $region55: #{tpu_custom_call.1} parent=5 // pred_region
        %s1303 = ssub.s32 %s14, 2
        // Predicated region
        $region57: #{tpu_custom_call.1} parent=55 // pred_check
          %p1304 = pneg %p107
        $region58: #{tpu_custom_call.1} parent=55 // pred_check_branch
          %1306 = sbr.rel (%p1304) target = $region60
        $region59: #{tpu_custom_call.1} parent=55 // pred_region
          %s1307 = smul.u32 16, %s25
          %p1308 = scmp.lt.s32.totalorder %s1307, 31
          %s1309 = scalar_select %p1308, %s1307, 31
          %s1310 = smul.addr %s1309, 8
          %s1311 = scalar_lea.vmem %s2, %s1310
        $region60: #{tpu_custom_call.1} parent=55 // pred_fallthru
          _
      $region56: #{tpu_custom_call.1} parent=5 // pred_fallthru
        _
    $region6: #{tpu_custom_call.1} parent=1 // loop_footer
      %s18 = sadd.s32 1, %s14
    $region7: #{tpu_custom_call.1} parent=1 // loop_footer_branch
      %13 = sbr.rel target = $region3
    $region8: #{tpu_custom_call.1} parent=1 // loop_exit
      _
    %1312 = vsyncpa [#allocation8], 1
    %s1313 = scalar_lea.sflag [#allocation8], 1
    %1314 = vsyncpa %s1313, 1
    %1315 = vsyncpa [#allocation10], 1
    %s1316 = scalar_lea.sflag [#allocation10], 1
    %1317 = vsyncpa %s1316, 1

</llo_original>
